<compile_context>
chip_gen: v7x
topology: tpu7x:2x2x1
jax: 0.10.0
libtpu: 0.0.40
codegen_flags: <defaults>
</compile_context>

<pallas_src>
import jax
import jax.numpy as jnp
from jax.experimental import pallas as pl
from jax.experimental.pallas import tpu as pltpu


def _round_up(v, m):
    return ((v + m - 1) // m) * m


# ----------------------------- kernels --------------------------------------


def _gated_attention_kernel(x_ref, w_ref, b_ref, o_ref):
    """Unpacked path: one logical row per physical row."""
    x = x_ref[...]                                        # native dtype -> MXU
    logits = jnp.dot(x.astype(w_ref.dtype), w_ref[...],
                     preferred_element_type=jnp.float32)
    logits = logits + b_ref[...]                          # bias already f32
    m = jnp.max(logits, axis=-1, keepdims=True)
    e = jnp.exp(logits - m)
    denom = jnp.sum(e, axis=-1, keepdims=True)
    attn = e * pl.reciprocal(denom, approx=True)          # EUP vrcp
    o_ref[...] = (x.astype(jnp.float32) * attn).astype(o_ref.dtype)


def _gated_attention_packed_kernel(x_ref, w_ref, b_ref, mask_ref, o_ref):
    """Lane-dense path for d_model < 128: g = 128 // d logical rows per
    physical row of width L = g*d (= 128 lanes).

    w_ref    : (L, L) block-diagonal replication of W (in,out layout).
    b_ref    : (1, L) f32 bias tiled g times.
    mask_ref : (L, L) f32 block-diagonal ones — broadcasts per-segment softmax
               denominators to every lane of the segment via one MXU matmul.

    Softmax stability: subtract the max over the whole packed row.  It is
    constant within each d-lane segment (softmax is shift-invariant) and is
    >= every segment max, so exp arguments are <= 0.  Segments could only
    underflow if logits within one packed row differed by ~80+, which does
    not happen for gating activations.
    """
    x = x_ref[...]
    logits = jnp.dot(x.astype(w_ref.dtype), w_ref[...],
                     preferred_element_type=jnp.float32)
    logits = logits + b_ref[...]
    m = jnp.max(logits, axis=-1, keepdims=True)           # per physical row
    e = jnp.exp(logits - m)
    # Segmented (per logical row) sum, broadcast back to every lane of the
    # segment.  HIGHEST precision keeps the f32 denominator accurate.
    denom = jnp.dot(e, mask_ref[...], preferred_element_type=jnp.float32,
                    precision=jax.lax.Precision.HIGHEST)
    attn = e * pl.reciprocal(denom, approx=True)
    o_ref[...] = (x.astype(jnp.float32) * attn).astype(o_ref.dtype)


# ----------------------------- wrapper --------------------------------------


def ttm_gated_attention(x, weight, bias, *, weight_transposed=False,
                        use_bf16_matmul=False,
                        target_tile_bytes=2 << 20, max_rows_per_tile=8192):
    """TTMGatedAttention forward: x * softmax(x @ W^T + b, axis=-1).

    Args:
      x:      [B, c, patches, d_model]
      weight: [out, in] (PyTorch nn.Linear layout) or [in, out] if
              weight_transposed=True.  NOTE: with a square weight this cannot
              be shape-checked, so the flag must match how the weight is laid
              out.  Pre-transposing once (weight_transposed=True) avoids a
              per-call d^2 HBM transpose for repeated inference.
      bias:   [out]
      use_bf16_matmul: cast W (and x, matmul-only) to bf16 for the logits
              matmul; softmax/gating stay f32.  Off by default (the op is
              HBM-bound; mostly helps for large d_model on v6e/v7x).
    """
    B, c, p, d = x.shape
    if weight_transposed:
        in_size, out_size = weight.shape
        w_t = weight                       # already (in, out)
    else:
        out_size, in_size = weight.shape   # PyTorch layout (out, in)
        w_t = weight.T
    assert in_size == d and out_size == d, \
        "gating requires out_size == in_size == d_model"

    M = B * c * p
    itemsize = jnp.dtype(x.dtype).itemsize
    # Packed-sublane multiple of the input dtype: 8 f32, 16 bf16, 32 int8/fp8.
    sub = 8 * max(1, 4 // itemsize)

    # Lane-dense packing: fold g = 128//d logical rows into one 128-lane row.
    g = 1
    if d < 128 and 128 % d == 0 and M % (128 // d) == 0:
        g = 128 // d
    L = g * d
    Mp = M // g

    if use_bf16_matmul and w_t.dtype == jnp.float32:
        w_t = w_t.astype(jnp.bfloat16)

    if g > 1:
        # Block-diagonal replication of W and the segment-sum ones mask.
        w_full = jnp.kron(jnp.eye(g, dtype=w_t.dtype), w_t)               # (L, L)
        seg_mask = jnp.kron(jnp.eye(g, dtype=jnp.float32),
                            jnp.ones((d, d), jnp.float32))                # (L, L)
    else:
        w_full = w_t
        seg_mask = None

    x2 = x.reshape(Mp, L)                         # free row-major reshape
    b2 = jnp.tile(bias.astype(jnp.float32), (g,)).reshape(1, L)

    # --- row tile: target ~target_tile_bytes of input per grid step ---------
    row_bytes = L * itemsize
    tm = max(sub, min(target_tile_bytes // row_bytes, max_rows_per_tile))
    # Keep >= 2 grid steps so the "parallel" row axis can occupy both v7x
    # TensorCores (no effect on single-TC v5e/v6e).
    half = _round_up(max(pl.cdiv(Mp, 2), 1), sub)
    tm = min(tm, max(sub, half))
    tm = _round_up(tm, sub)
    tm = min(tm, _round_up(Mp, sub))
    grid = (pl.cdiv(Mp, tm),)

    # --- VMEM budget (explicit, derated for v7x's smaller VMEM) -------------
    w_itemsize = jnp.dtype(w_full.dtype).itemsize
    vmem_needed = (
        2 * tm * L * itemsize              # double-buffered x tiles
        + 2 * tm * L * itemsize            # double-buffered out tiles
        + 2 * L * L * w_itemsize           # weight (worst case double-buffered)
        + (2 * L * L * 4 if g > 1 else 0)  # segment-sum mask
        + 2 * L * 4                        # bias
        + 6 * tm * L * 4                   # f32 intermediates / headroom
    )
    try:
        vmem_cap = int(pltpu.get_tpu_info().vmem_capacity_bytes)
    except Exception:                      # pragma: no cover
        vmem_cap = 64 << 20                # conservative (v7x per-core)
    vmem_limit = int(max(16 << 20,
                         min(vmem_needed + (4 << 20), vmem_cap - (8 << 20))))

    # --- advisory cost estimate ---------------------------------------------
    flops = 2 * M * d * d + (2 * Mp * L * L if g > 1 else 0)
    bytes_accessed = (2 * M * d * itemsize + L * L * w_itemsize
                      + (L * L * 4 if g > 1 else 0) + L * 4)
    cost = pl.CostEstimate(flops=int(flops), transcendentals=int(M * d),
                           bytes_accessed=int(bytes_accessed))

    def _call(single_buffer_resident):
        # Weight/bias/mask have constant index_maps -> single-buffer them to
        # halve their resident VMEM (valuable for large d_model, free here).
        res_kw = ({"pipeline_mode": pl.Buffered(1)}
                  if single_buffer_resident else {})
        x_spec = pl.BlockSpec((tm, L), lambda i: (i, 0))
        o_spec = pl.BlockSpec((tm, L), lambda i: (i, 0))
        w_spec = pl.BlockSpec((L, L), lambda i: (0, 0), **res_kw)
        b_spec = pl.BlockSpec((1, L), lambda i: (0, 0), **res_kw)
        if g > 1:
            m_spec = pl.BlockSpec((L, L), lambda i: (0, 0), **res_kw)
            kernel = _gated_attention_packed_kernel
            in_specs = [x_spec, w_spec, b_spec, m_spec]
            operands = (x2, w_full, b2, seg_mask)
        else:
            kernel = _gated_attention_kernel
            in_specs = [x_spec, w_spec, b_spec]
            operands = (x2, w_full, b2)
        fn = pl.pallas_call(
            kernel,
            out_shape=jax.ShapeDtypeStruct((Mp, L), x.dtype),
            grid_spec=pltpu.PrefetchScalarGridSpec(
                num_scalar_prefetch=0, grid=grid,
                in_specs=in_specs, out_specs=o_spec),
            compiler_params=pltpu.CompilerParams(
                dimension_semantics=("parallel",),
                vmem_limit_bytes=vmem_limit),
            cost_estimate=cost,
        )
        return fn(*operands)

    try:
        out2 = _call(True)
    except Exception:   # pragma: no cover — JAX builds w/o Buffered(1) support
        out2 = _call(False)

    return out2.reshape(B, c, p, d)


# ----------------------------- reference & test -----------------------------


def _reference(x, weight, bias):
    logits = jnp.einsum("bcpd,od->bcpo", x, weight,
                        precision=jax.lax.Precision.HIGHEST) + bias
    attn = jax.nn.softmax(logits, axis=-1)
    return x * attn


if __name__ == "__main__":
    key = jax.random.PRNGKey(0)
    B, c, patches, d_model = 2, 4, 8, 32

    kx, kw, kb = jax.random.split(key, 3)
    x = jax.random.normal(kx, (B, c, patches, d_model), dtype=jnp.float32)
    # Deterministic nn.Linear(in_size, out_size) params (out == in == d_model).
    bound = 1.0 / jnp.sqrt(d_model)
    weight = jax.random.uniform(kw, (d_model, d_model), jnp.float32, -bound, bound)
    bias = jax.random.uniform(kb, (d_model,), jnp.float32, -bound, bound)

    # Lane-dense packed path (g = 128 // 32 = 4).
    out = ttm_gated_attention(x, weight, bias)
    jax.block_until_ready(out)
    ref = _reference(x, weight, bias)
    # Tolerance accommodates the approximate (EUP) reciprocal in the softmax
    # denominator; rows of attn sum to 1 only approximately.
    assert jnp.allclose(out, ref, atol=1e-3, rtol=1e-3), "packed path mismatch"

    # Also exercise the unpacked fallback (rows not divisible by 128 // d).
    x_odd = jax.random.normal(kx, (1, 1, 9, d_model), dtype=jnp.float32)
    out_odd = ttm_gated_attention(x_odd, weight, bias)
    jax.block_until_ready(out_odd)
    ref_odd = _reference(x_odd, weight, bias)
    assert jnp.allclose(out_odd, ref_odd, atol=1e-3, rtol=1e-3), \
        "fallback path mismatch"

    print("KERNEL_OK")
</pallas_src>

<mosaic_0001>
module attributes {stable_mosaic.version = 11 : i64} {
  func.func @_gated_attention_packed_kernel(%arg0: i32, %arg1: memref<8x128xf32, #tpu.memory_space<vmem>>, %arg2: memref<128x128xf32, #tpu.memory_space<vmem>>, %arg3: memref<1x128xf32, #tpu.memory_space<vmem>>, %arg4: memref<128x128xf32, #tpu.memory_space<vmem>>, %arg5: memref<8x128xf32, #tpu.memory_space<vmem>>) attributes {dimension_semantics = [#tpu.dimension_semantics<parallel>], iteration_bounds = array<i64: 2>, scalar_prefetch = 0 : i64, scratch_operands = 0 : i64, tpu.core_type = #tpu.core_type<tc>, window_params = [{transform_indices = @transform_0, window_bounds = array<i64: 8, 128>}, {pipeline_mode = #tpu.pipeline_mode<synchronous>, transform_indices = @transform_1, window_bounds = array<i64: 128, 128>}, {pipeline_mode = #tpu.pipeline_mode<synchronous>, transform_indices = @transform_2, window_bounds = array<i64: 1, 128>}, {pipeline_mode = #tpu.pipeline_mode<synchronous>, transform_indices = @transform_3, window_bounds = array<i64: 128, 128>}, {transform_indices = @transform_4, window_bounds = array<i64: 8, 128>}]} {
    %c0 = arith.constant 0 : index
    %c0_0 = arith.constant 0 : index
    %0 = vector.load %arg1[%c0, %c0_0] : memref<8x128xf32, #tpu.memory_space<vmem>>, vector<8x128xf32>
    %c0_1 = arith.constant 0 : index
    %c0_2 = arith.constant 0 : index
    %1 = vector.load %arg2[%c0_1, %c0_2] : memref<128x128xf32, #tpu.memory_space<vmem>>, vector<128x128xf32>
    %cst = arith.constant dense<0.000000e+00> : vector<8x128xf32>
    %2 = tpu.matmul %0, %1, %cst {dimension_numbers = #tpu.dot_dimension_numbers<[1], [0], [0], [1], [0, 0, 1, 1], [], []>} : vector<8x128xf32>, vector<128x128xf32>, vector<8x128xf32> -> vector<8x128xf32>
    %c0_3 = arith.constant 0 : index
    %c0_4 = arith.constant 0 : index
    %3 = vector.load %arg3[%c0_3, %c0_4] : memref<1x128xf32, #tpu.memory_space<vmem>>, vector<1x128xf32>
    %4 = vector.broadcast %3 : vector<1x128xf32> to vector<8x128xf32>
    %5 = arith.addf %2, %4 : vector<8x128xf32>
    %cst_5 = arith.constant dense<0xFF800000> : vector<8xf32>
    %6 = vector.multi_reduction <maximumf>, %5, %cst_5 [1] : vector<8x128xf32> to vector<8xf32>
    %7 = vector.shape_cast %6 : vector<8xf32> to vector<8x1xf32>
    %8 = vector.broadcast %7 : vector<8x1xf32> to vector<8x128xf32>
    %9 = arith.subf %5, %8 : vector<8x128xf32>
    %10 = math.exp %9 : vector<8x128xf32>
    %c0_6 = arith.constant 0 : index
    %c0_7 = arith.constant 0 : index
    %11 = vector.load %arg4[%c0_6, %c0_7] : memref<128x128xf32, #tpu.memory_space<vmem>>, vector<128x128xf32>
    %cst_8 = arith.constant dense<0.000000e+00> : vector<8x128xf32>
    %12 = tpu.matmul %10, %11, %cst_8 {dimension_numbers = #tpu.dot_dimension_numbers<[1], [0], [0], [1], [0, 0, 1, 1], [], []>, precision = #tpu.contract_precision<fp32>} : vector<8x128xf32>, vector<128x128xf32>, vector<8x128xf32> -> vector<8x128xf32>
    %13 = tpu.reciprocal %12 {approx = true} : vector<8x128xf32> -> vector<8x128xf32>
    %14 = arith.mulf %10, %13 : vector<8x128xf32>
    %15 = arith.mulf %0, %14 : vector<8x128xf32>
    %c0_9 = arith.constant 0 : index
    %c0_10 = arith.constant 0 : index
    %16 = vector.load %arg5[%c0_9, %c0_10] : memref<8x128xf32, #tpu.memory_space<vmem>>, vector<8x128xf32>
    tpu.vector_store %arg5[%c0_9, %c0_10], %15 {strides = array<i32>} : memref<8x128xf32, #tpu.memory_space<vmem>>, vector<8x128xf32>,
    return
  }
  func.func @transform_0(%arg0: i32) -> (i32, i32) {
    %c0_i32 = arith.constant 0 : i32
    %c0_i32_0 = arith.constant 0 : i32
    return %arg0, %c0_i32 : i32, i32
  }
  func.func @transform_1(%arg0: i32) -> (i32, i32) {
    %c0_i32 = arith.constant 0 : i32
    %c0_i32_0 = arith.constant 0 : i32
    %c0_i32_1 = arith.constant 0 : i32
    return %c0_i32, %c0_i32_0 : i32, i32
  }
  func.func @transform_2(%arg0: i32) -> (i32, i32) {
    %c0_i32 = arith.constant 0 : i32
    %c0_i32_0 = arith.constant 0 : i32
    %c0_i32_1 = arith.constant 0 : i32
    return %c0_i32, %c0_i32_0 : i32, i32
  }
  func.func @transform_3(%arg0: i32) -> (i32, i32) {
    %c0_i32 = arith.constant 0 : i32
    %c0_i32_0 = arith.constant 0 : i32
    %c0_i32_1 = arith.constant 0 : i32
    return %c0_i32, %c0_i32_0 : i32, i32
  }
  func.func @transform_4(%arg0: i32) -> (i32, i32) {
    %c0_i32 = arith.constant 0 : i32
    %c0_i32_0 = arith.constant 0 : i32
    return %arg0, %c0_i32 : i32, i32
  }
}

module attributes {stable_mosaic.version = 11 : i64} {
  func.func @_gated_attention_packed_kernel(%arg0: i32, %arg1: memref<8x128xf32, #tpu.memory_space<vmem>>, %arg2: memref<128x128xf32, #tpu.memory_space<vmem>>, %arg3: memref<1x128xf32, #tpu.memory_space<vmem>>, %arg4: memref<128x128xf32, #tpu.memory_space<vmem>>, %arg5: memref<8x128xf32, #tpu.memory_space<vmem>>) attributes {dimension_semantics = [#tpu.dimension_semantics<parallel>], iteration_bounds = array<i64: 2>, scalar_prefetch = 0 : i64, scratch_operands = 0 : i64, tpu.core_type = #tpu.core_type<tc>, window_params = [{transform_indices = @transform_0, window_bounds = array<i64: 8, 128>}, {pipeline_mode = #tpu.pipeline_mode<synchronous>, transform_indices = @transform_1, window_bounds = array<i64: 128, 128>}, {pipeline_mode = #tpu.pipeline_mode<synchronous>, transform_indices = @transform_2, window_bounds = array<i64: 1, 128>}, {pipeline_mode = #tpu.pipeline_mode<synchronous>, transform_indices = @transform_3, window_bounds = array<i64: 128, 128>}, {transform_indices = @transform_4, window_bounds = array<i64: 8, 128>}]} {
    %c0 = arith.constant 0 : index
    %c0_0 = arith.constant 0 : index
    %0 = vector.load %arg1[%c0, %c0_0] : memref<8x128xf32, #tpu.memory_space<vmem>>, vector<8x128xf32>
    %c0_1 = arith.constant 0 : index
    %c0_2 = arith.constant 0 : index
    %1 = vector.load %arg2[%c0_1, %c0_2] : memref<128x128xf32, #tpu.memory_space<vmem>>, vector<128x128xf32>
    %cst = arith.constant dense<0.000000e+00> : vector<8x128xf32>
    %2 = tpu.matmul %0, %1, %cst {dimension_numbers = #tpu.dot_dimension_numbers<[1], [0], [0], [1], [0, 0, 1, 1], [], []>} : vector<8x128xf32>, vector<128x128xf32>, vector<8x128xf32> -> vector<8x128xf32>
    %c0_3 = arith.constant 0 : index
    %c0_4 = arith.constant 0 : index
    %3 = vector.load %arg3[%c0_3, %c0_4] : memref<1x128xf32, #tpu.memory_space<vmem>>, vector<1x128xf32>
    %4 = vector.broadcast %3 : vector<1x128xf32> to vector<8x128xf32>
    %5 = arith.addf %2, %4 : vector<8x128xf32>
    %cst_5 = arith.constant dense<0xFF800000> : vector<8xf32>
    %6 = vector.multi_reduction <maximumf>, %5, %cst_5 [1] : vector<8x128xf32> to vector<8xf32>
    %7 = vector.shape_cast %6 : vector<8xf32> to vector<8x1xf32>
    %8 = vector.broadcast %7 : vector<8x1xf32> to vector<8x128xf32>
    %9 = arith.subf %5, %8 : vector<8x128xf32>
    %10 = math.exp %9 : vector<8x128xf32>
    %c0_6 = arith.constant 0 : index
    %c0_7 = arith.constant 0 : index
    %11 = vector.load %arg4[%c0_6, %c0_7] : memref<128x128xf32, #tpu.memory_space<vmem>>, vector<128x128xf32>
    %cst_8 = arith.constant dense<0.000000e+00> : vector<8x128xf32>
    %12 = tpu.matmul %10, %11, %cst_8 {dimension_numbers = #tpu.dot_dimension_numbers<[1], [0], [0], [1], [0, 0, 1, 1], [], []>, precision = #tpu.contract_precision<fp32>} : vector<8x128xf32>, vector<128x128xf32>, vector<8x128xf32> -> vector<8x128xf32>
    %13 = tpu.reciprocal %12 {approx = true} : vector<8x128xf32> -> vector<8x128xf32>
    %14 = arith.mulf %10, %13 : vector<8x128xf32>
    %15 = arith.mulf %0, %14 : vector<8x128xf32>
    %c0_9 = arith.constant 0 : index
    %c0_10 = arith.constant 0 : index
    %16 = vector.load %arg5[%c0_9, %c0_10] : memref<8x128xf32, #tpu.memory_space<vmem>>, vector<8x128xf32>
    tpu.vector_store %arg5[%c0_9, %c0_10], %15 {strides = array<i32>} : memref<8x128xf32, #tpu.memory_space<vmem>>, vector<8x128xf32>,
    return
  }
  func.func @transform_0(%arg0: i32) -> (i32, i32) {
    %c0_i32 = arith.constant 0 : i32
    %c0_i32_0 = arith.constant 0 : i32
    return %arg0, %c0_i32 : i32, i32
  }
  func.func @transform_1(%arg0: i32) -> (i32, i32) {
    %c0_i32 = arith.constant 0 : i32
    %c0_i32_0 = arith.constant 0 : i32
    %c0_i32_1 = arith.constant 0 : i32
    return %c0_i32, %c0_i32_0 : i32, i32
  }
  func.func @transform_2(%arg0: i32) -> (i32, i32) {
    %c0_i32 = arith.constant 0 : i32
    %c0_i32_0 = arith.constant 0 : i32
    %c0_i32_1 = arith.constant 0 : i32
    return %c0_i32, %c0_i32_0 : i32, i32
  }
  func.func @transform_3(%arg0: i32) -> (i32, i32) {
    %c0_i32 = arith.constant 0 : i32
    %c0_i32_0 = arith.constant 0 : i32
    %c0_i32_1 = arith.constant 0 : i32
    return %c0_i32, %c0_i32_0 : i32, i32
  }
  func.func @transform_4(%arg0: i32) -> (i32, i32) {
    %c0_i32 = arith.constant 0 : i32
    %c0_i32_0 = arith.constant 0 : i32
    return %arg0, %c0_i32 : i32, i32
  }
}

</mosaic_0001>

<llo_original>
// kernel: tpu_custom_call.1
$region0: #{tpu_custom_call.1}
  #allocation0 [shape = 'u32[]', space=smem, size = 0x4, offset = 0x4, fixed_abs, tag = 'smem constant byte address 0x4 - core index']
  #allocation1 [shape = 'u32[144,128]{1,0:T(1,128)}', space=vmem, size = 0x12000, scoped, tag = 'internal scratch']
  %s0 = inlined_call_operand.hbm [shape: f32[16,128], index: 0, kind: input, shape index: {}]
  %s1 = inlined_call_operand.hbm [shape: f32[128,128], index: 1, kind: input, shape index: {}]
  %s2 = inlined_call_operand.vmem [shape: f32[1,128], index: 2, kind: input, shape index: {}]
  %s3 = inlined_call_operand.hbm [shape: f32[128,128], index: 3, kind: input, shape index: {}]
  %s4 = inlined_call_operand.hbm [shape: f32[16,128], index: 4, kind: output, shape index: {}]
  %s5 = sld [smem:[#allocation0]]
  $region61: #{tpu_custom_call.1} parent=0
    _
  %s7 = ssub.s32 1, %s5
  %s8 = scalar_select 0, %s7, %s5
  $region1: #{tpu_custom_call.1} parent=0
    #allocation2 [shape = 'u8[8192]{0}', space=vmem, size = 0x2000, scoped, tag = 'input window, operand 0']
    #allocation3 [shape = 's32[2]{0}', space=sflag, size = 0x8, scoped, tag = 'scoped memory for tpu_custom_call.1']
    #allocation4 [shape = 's32[2]{0}', space=sflag, size = 0x8, scoped, tag = 'scoped memory for tpu_custom_call.1']
    #allocation5 [shape = 'u8[65536]{0}', space=vmem, size = 0x10000, scoped, tag = 'input window, operand 1, single buffered']
    #allocation6 [shape = 's32[1]{0}', space=sflag, size = 0x4, scoped, tag = 'scoped memory for tpu_custom_call.1']
    #allocation7 [shape = 'u8[65536]{0}', space=vmem, size = 0x10000, scoped, tag = 'input window, operand 3, single buffered']
    #allocation8 [shape = 'u8[8192]{0}', space=vmem, size = 0x2000, scoped, tag = 'output window, operand 0']
    %9 = vsyncpa [#allocation3], 0
    %s10 = scalar_lea.sflag [#allocation3], 1
    %11 = vsyncpa %s10, 0
    %12 = vsyncpa [#allocation6], 0
    %13 = vsyncpa [#allocation4], 0
    %s14 = scalar_lea.sflag [#allocation4], 1
    %15 = vsyncpa %s14, 0
    loop: start=0, step=1, limit=4
    $region2: #{tpu_custom_call.1} parent=1 // loop_pre_header
      _
    $region3: #{tpu_custom_call.1} parent=1 // loop_header
      %s17 = sphi 0, %s21
      %p18 = scmp.ge.s32.totalorder %s17, 4
      %s27 = sphi 0, %s29
      %s30 = sphi 0, %s27
      %s31 = sphi 0, %s30
      %s47 = sphi 0, %s31
      %s51 = sphi 0, %s51
      %s53 = sphi 0, %s51
      %s54 = sphi 0, %s53
      %s68 = sphi 0, %s54
      %s72 = sphi 0, %s72
      %s74 = sphi 0, %s72
      %s75 = sphi 0, %s74
      %s89 = sphi 0, %s75
      %s93 = sphi 0, %s93
      %s95 = sphi 0, %s93
      %s96 = sphi 0, %s95
      %s110 = sphi 0, %s96
      %s116 = sphi 0, %s118
      %s119 = sphi 0, %s116
      %s120 = sphi 0, %s119
      %s136 = sphi 0, %s120
    $region4: #{tpu_custom_call.1} parent=1 // loop_header_branch
      %20 = sbr.rel (%p18) target = $region8
    $region5: #{tpu_custom_call.1} parent=1 // loop_body
      %s22 = ssub.s32 %s17, 1
      %s23 = ssub.s32 %s17, 2
      %s24 = sadd.s32 %s17, 1
      %s25 = ssub.s32 %s17, %s24
      %p26 = scmp.eq.s32.totalorder %s25, 0
      %s28 = sadd.s32 %s27, 1
      %s29 = scalar_select %p26, %s27, %s28
      %p32 = pneg %p26
      %p33 = scmp.eq.s32.totalorder %s17, 1
      %p34 = por %p32, %p33
      %p35 = scmp.ne.s32.totalorder %s27, %s30
      %p36 = scmp.eq.s32.totalorder %s17, 0
      %p37 = por %p35, %p36
      %p38 = scmp.ne.s32.totalorder %s27, %s30
      %p39 = scmp.eq.s32.totalorder %s22, 1
      %p40 = por %p38, %p39
      %p41 = scmp.ne.s32.totalorder %s30, %s31
      %p42 = scmp.eq.s32.totalorder %s22, 0
      %p43 = por %p41, %p42
      %p44 = scmp.ne.s32.totalorder %s30, %s31
      %p45 = scmp.eq.s32.totalorder %s23, 1
      %p46 = por %p44, %p45
      %p48 = scmp.ne.s32.totalorder %s31, %s47
      %p49 = scmp.eq.s32.totalorder %s23, 0
      %p50 = por %p48, %p49
      %s52 = sadd.s32 %s51, 1
      %p55 = scmp.eq.s32.totalorder %s17, 1
      %p56 = scmp.ne.s32.totalorder %s51, %s53
      %p57 = scmp.eq.s32.totalorder %s17, 0
      %p58 = por %p56, %p57
      %p59 = scmp.ne.s32.totalorder %s51, %s53
      %p60 = scmp.eq.s32.totalorder %s22, 1
      %p61 = por %p59, %p60
      %p62 = scmp.ne.s32.totalorder %s53, %s54
      %p63 = scmp.eq.s32.totalorder %s22, 0
      %p64 = por %p62, %p63
      %p65 = scmp.ne.s32.totalorder %s53, %s54
      %p66 = scmp.eq.s32.totalorder %s23, 1
      %p67 = por %p65, %p66
      %p69 = scmp.ne.s32.totalorder %s54, %s68
      %p70 = scmp.eq.s32.totalorder %s23, 0
      %p71 = por %p69, %p70
      %s73 = sadd.s32 %s72, 1
      %p76 = scmp.eq.s32.totalorder %s17, 1
      %p77 = scmp.ne.s32.totalorder %s72, %s74
      %p78 = scmp.eq.s32.totalorder %s17, 0
      %p79 = por %p77, %p78
      %p80 = scmp.ne.s32.totalorder %s72, %s74
      %p81 = scmp.eq.s32.totalorder %s22, 1
      %p82 = por %p80, %p81
      %p83 = scmp.ne.s32.totalorder %s74, %s75
      %p84 = scmp.eq.s32.totalorder %s22, 0
      %p85 = por %p83, %p84
      %p86 = scmp.ne.s32.totalorder %s74, %s75
      %p87 = scmp.eq.s32.totalorder %s23, 1
      %p88 = por %p86, %p87
      %p90 = scmp.ne.s32.totalorder %s75, %s89
      %p91 = scmp.eq.s32.totalorder %s23, 0
      %p92 = por %p90, %p91
      %s94 = sadd.s32 %s93, 1
      %p97 = scmp.eq.s32.totalorder %s17, 1
      %p98 = scmp.ne.s32.totalorder %s93, %s95
      %p99 = scmp.eq.s32.totalorder %s17, 0
      %p100 = por %p98, %p99
      %p101 = scmp.ne.s32.totalorder %s93, %s95
      %p102 = scmp.eq.s32.totalorder %s22, 1
      %p103 = por %p101, %p102
      %p104 = scmp.ne.s32.totalorder %s95, %s96
      %p105 = scmp.eq.s32.totalorder %s22, 0
      %p106 = por %p104, %p105
      %p107 = scmp.ne.s32.totalorder %s95, %s96
      %p108 = scmp.eq.s32.totalorder %s23, 1
      %p109 = por %p107, %p108
      %p111 = scmp.ne.s32.totalorder %s96, %s110
      %p112 = scmp.eq.s32.totalorder %s23, 0
      %p113 = por %p111, %p112
      %s114 = ssub.s32 %s17, %s24
      %p115 = scmp.eq.s32.totalorder %s114, 0
      %s117 = sadd.s32 %s116, 1
      %s118 = scalar_select %p115, %s116, %s117
      %p121 = pneg %p115
      %p122 = scmp.eq.s32.totalorder %s17, 1
      %p123 = por %p121, %p122
      %p124 = scmp.ne.s32.totalorder %s116, %s119
      %p125 = scmp.eq.s32.totalorder %s17, 0
      %p126 = por %p124, %p125
      %p127 = scmp.ne.s32.totalorder %s116, %s119
      %p128 = scmp.eq.s32.totalorder %s22, 1
      %p129 = por %p127, %p128
      %p130 = scmp.ne.s32.totalorder %s119, %s120
      %p131 = scmp.eq.s32.totalorder %s22, 0
      %p132 = por %p130, %p131
      %p133 = scmp.ne.s32.totalorder %s119, %s120
      %p134 = scmp.eq.s32.totalorder %s23, 1
      %p135 = por %p133, %p134
      %p137 = scmp.ne.s32.totalorder %s120, %s136
      %p138 = scmp.eq.s32.totalorder %s23, 0
      %p139 = por %p137, %p138
      %p140 = scmp.le.s32.totalorder 1, %s17
      %p141 = scmp.lt.s32.totalorder %s17, 3
      %p142 = pnand %p140, %p141
      %p143 = pneg %p142
      // Predicated region
      $region9: #{tpu_custom_call.1} parent=5 // pred_check
        _
      $region10: #{tpu_custom_call.1} parent=5 // pred_check_branch
        %145 = sbr.rel (%p142) target = $region12
      $region11: #{tpu_custom_call.1} parent=5 // pred_region
        %s146 = ssub.s32 %s17, 1
        // Predicated region
        $region13: #{tpu_custom_call.1} parent=11 // pred_check
          %p147 = pneg %p64
        $region14: #{tpu_custom_call.1} parent=11 // pred_check_branch
          %149 = sbr.rel (%p147) target = $region16
        $region15: #{tpu_custom_call.1} parent=11 // pred_region
          %s151 = ssub.s32 2048, 2048
          %152 = vsyncadd [#allocation6], %s151
          %s153 = sshll.u32 [#allocation5], 4
          %s154 = int_to_ptr.vmem [resolvable:$true] %s153
          %159 = dma.hbm_to_vmem [thread:$0]  %s1, 2048, %s154, [#allocation6], 128, 128, 8
        $region16: #{tpu_custom_call.1} parent=11 // pred_fallthru
          _
        // Predicated region
        $region17: #{tpu_custom_call.1} parent=11 // pred_check
          %p160 = pneg %p85
        $region18: #{tpu_custom_call.1} parent=11 // pred_check_branch
          %162 = sbr.rel (%p160) target = $region20
        $region19: #{tpu_custom_call.1} parent=11 // pred_region
          _
        $region20: #{tpu_custom_call.1} parent=11 // pred_fallthru
          _
        // Predicated region
        $region21: #{tpu_custom_call.1} parent=11 // pred_check
          %p163 = pneg %p106
        $region22: #{tpu_custom_call.1} parent=11 // pred_check_branch
          %165 = sbr.rel (%p163) target = $region24
        $region23: #{tpu_custom_call.1} parent=11 // pred_region
          %s167 = ssub.s32 2048, 2048
          %168 = vsyncadd [#allocation6], %s167
          %s169 = sshll.u32 [#allocation7], 4
          %s170 = int_to_ptr.vmem [resolvable:$true] %s169
          %175 = dma.hbm_to_vmem [thread:$0]  %s3, 2048, %s170, [#allocation6], 128, 128, 8
        $region24: #{tpu_custom_call.1} parent=11 // pred_fallthru
          _
      $region12: #{tpu_custom_call.1} parent=5 // pred_fallthru
        _
      %p176 = scmp.lt.s32.totalorder %s17, 2
      // Predicated region
      $region25: #{tpu_custom_call.1} parent=5 // pred_check
        %p177 = pneg %p176
      $region26: #{tpu_custom_call.1} parent=5 // pred_check_branch
        %179 = sbr.rel (%p177) target = $region28
      $region27: #{tpu_custom_call.1} parent=5 // pred_region
        // Predicated region
        $region29: #{tpu_custom_call.1} parent=27 // pred_check
          %p180 = pneg %p37
        $region30: #{tpu_custom_call.1} parent=27 // pred_check_branch
          %182 = sbr.rel (%p180) target = $region32
        $region31: #{tpu_custom_call.1} parent=27 // pred_region
          %s183 = sand.u32 %s27, 1
          %s184 = scalar_lea.sflag [#allocation3], %s183
          %s185 = sand.u32 %s27, 1
          %s186 = smul.addr %s185, 8
          %s187 = scalar_lea.vmem [#allocation2], %s186
          %s189 = ssub.s32 128, 128
          %190 = vsyncadd %s184, %s189
          %s191 = smul.addr %s17, 128
          %s192 = scalar_lea.hbm %s0, %s191
          %s194 = sshll.u32 %s187, 4
          %s195 = int_to_ptr.vmem [resolvable:$true] %s194
          %197 = dma.hbm_to_vmem [thread:$0]  %s192, 128, %s195, %s184
        $region32: #{tpu_custom_call.1} parent=27 // pred_fallthru
          _
      $region28: #{tpu_custom_call.1} parent=5 // pred_fallthru
        _
      %p198 = scmp.le.s32.totalorder 1, %s17
      %p199 = scmp.lt.s32.totalorder %s17, 3
      %p200 = pnand %p198, %p199
      %p201 = pneg %p200
      // Predicated region
      $region33: #{tpu_custom_call.1} parent=5 // pred_check
        _
      $region34: #{tpu_custom_call.1} parent=5 // pred_check_branch
        %203 = sbr.rel (%p200) target = $region36
      $region35: #{tpu_custom_call.1} parent=5 // pred_region
        %s204 = ssub.s32 %s17, 1
        %s205 = sand.u32 %s30, 1
        %s206 = scalar_lea.sflag [#allocation3], %s205
        %s207 = sand.u32 %s30, 1
        %s208 = smul.addr %s207, 8
        %s209 = scalar_lea.vmem [#allocation2], %s208
        // Predicated region
        $region37: #{tpu_custom_call.1} parent=35 // pred_check
          %p210 = pneg %p43
        $region38: #{tpu_custom_call.1} parent=35 // pred_check_branch
          %212 = sbr.rel (%p210) target = $region40
        $region39: #{tpu_custom_call.1} parent=35 // pred_region
          %213 = dma.done %s206, 128
        $region40: #{tpu_custom_call.1} parent=35 // pred_fallthru
          _
        // Predicated region
        $region41: #{tpu_custom_call.1} parent=35 // pred_check
          %p214 = pneg %p64
        $region42: #{tpu_custom_call.1} parent=35 // pred_check_branch
          %216 = sbr.rel (%p214) target = $region44
        $region43: #{tpu_custom_call.1} parent=35 // pred_region
          %217 = dma.done [#allocation6], 2048
        $region44: #{tpu_custom_call.1} parent=35 // pred_fallthru
          _
        // Predicated region
        $region45: #{tpu_custom_call.1} parent=35 // pred_check
          %p218 = pneg %p106
        $region46: #{tpu_custom_call.1} parent=35 // pred_check_branch
          %220 = sbr.rel (%p218) target = $region48
        $region47: #{tpu_custom_call.1} parent=35 // pred_region
          %221 = dma.done [#allocation6], 2048
        $region48: #{tpu_custom_call.1} parent=35 // pred_fallthru
          _
        %s222 = sand.u32 %s30, 1
        %s223 = scalar_lea.sflag [#allocation3], %s222
        %s224 = sand.u32 %s30, 1
        %s225 = smul.addr %s224, 8
        %s226 = scalar_lea.vmem [#allocation2], %s225
        %p227 = pneg %p43
        %p228 = pneg %p40
        %p229 = pneg %p64
        %p230 = pneg %p61
        %p231 = pneg %p85
        %p232 = pneg %p82
        %p233 = pneg %p106
        %p234 = pneg %p103
        %p235 = pneg %p132
        %p236 = pneg %p129
        %s237 = sand.u32 %s119, 1
        %s238 = scalar_lea.sflag [#allocation4], %s237
        %s239 = sand.u32 %s119, 1
        %s240 = smul.addr %s239, 8
        %s241 = scalar_lea.vmem [#allocation8], %s240
        %v242 = vld [vmem:[%s209] sm:$0xff]
        %v243 = vld [vmem:[#allocation5] sm:$0xff]
        %v244 = vld [vmem:[#allocation5 + $0x8] sm:$0xff]
        %v245 = vld [vmem:[#allocation5 + $0x10] sm:$0xff]
        %v246 = vld [vmem:[#allocation5 + $0x18] sm:$0xff]
        %v247 = vld [vmem:[#allocation5 + $0x20] sm:$0xff]
        %v248 = vld [vmem:[#allocation5 + $0x28] sm:$0xff]
        %v249 = vld [vmem:[#allocation5 + $0x30] sm:$0xff]
        %v250 = vld [vmem:[#allocation5 + $0x38] sm:$0xff]
        %v251 = vld [vmem:[#allocation5 + $0x40] sm:$0xff]
        %v252 = vld [vmem:[#allocation5 + $0x48] sm:$0xff]
        %v253 = vld [vmem:[#allocation5 + $0x50] sm:$0xff]
        %v254 = vld [vmem:[#allocation5 + $0x58] sm:$0xff]
        %v255 = vld [vmem:[#allocation5 + $0x60] sm:$0xff]
        %v256 = vld [vmem:[#allocation5 + $0x68] sm:$0xff]
        %v257 = vld [vmem:[#allocation5 + $0x70] sm:$0xff]
        %v258 = vld [vmem:[#allocation5 + $0x78] sm:$0xff]
        %v259 = vld [vmem:[%s2] sm:$0x1]
        %v261 = vlaneseq
        %v262 = vshrl.u32 %v261, 7
        %v263 = vsub.s32 0, %v262
        %v264 = vrot.slane %v259, %v263
        %266 = vmatprep.subr.mxu0 0.0
        %267 = vmatpush1.msra.mxu0 %v243
        %268 = vmatprep.subr.mxu0 0.0
        %269 = vmatpush1.msra.mxu0 %v244
        %270 = vmatprep.subr.mxu0 0.0
        %271 = vmatpush1.msra.mxu0 %v245
        %272 = vmatprep.subr.mxu0 0.0
        %273 = vmatpush1.msra.mxu0 %v246
        %274 = vmatprep.subr.mxu0 0.0
        %275 = vmatpush1.msra.mxu0 %v247
        %276 = vmatprep.subr.mxu0 0.0
        %277 = vmatpush1.msra.mxu0 %v248
        %278 = vmatprep.subr.mxu0 0.0
        %279 = vmatpush1.msra.mxu0 %v249
        %280 = vmatprep.subr.mxu0 0.0
        %281 = vmatpush1.msra.mxu0 %v250
        %282 = vmatprep.subr.mxu0 0.0
        %283 = vmatpush1.msra.mxu0 %v251
        %284 = vmatprep.subr.mxu0 0.0
        %285 = vmatpush1.msra.mxu0 %v252
        %286 = vmatprep.subr.mxu0 0.0
        %287 = vmatpush1.msra.mxu0 %v253
        %288 = vmatprep.subr.mxu0 0.0
        %289 = vmatpush1.msra.mxu0 %v254
        %290 = vmatprep.subr.mxu0 0.0
        %291 = vmatpush1.msra.mxu0 %v255
        %292 = vmatprep.subr.mxu0 0.0
        %293 = vmatpush1.msra.mxu0 %v256
        %294 = vmatprep.subr.mxu0 0.0
        %295 = vmatpush1.msra.mxu0 %v257
        %296 = vmatprep.subr.mxu0 0.0
        %297 = vmatpush1.msra.mxu0 %v258
        %298 = vmatprep.subr.mxu0 0.0
        %299 = vmatpush1.msra.mxu0 0.0
        %300 = vmatprep.subr.mxu0 0.0
        %301 = vmatpush1.msra.mxu0 0.0
        %302 = vmatprep.subr.mxu0 0.0
        %303 = vmatpush1.msra.mxu0 0.0
        %304 = vmatprep.subr.mxu0 0.0
        %305 = vmatpush1.msra.mxu0 0.0
        %306 = vmatprep.subr.mxu0 0.0
        %307 = vmatpush1.msra.mxu0 0.0
        %308 = vmatprep.subr.mxu0 0.0
        %309 = vmatpush1.msra.mxu0 0.0
        %310 = vmatprep.subr.mxu0 0.0
        %311 = vmatpush1.msra.mxu0 0.0
        %312 = vmatprep.subr.mxu0 0.0
        %313 = vmatpush1.msra.mxu0 0.0
        %314 = vmatprep.subr.mxu0 0.0
        %315 = vmatpush1.msra.mxu0 0.0
        %316 = vmatprep.subr.mxu0 0.0
        %317 = vmatpush1.msra.mxu0 0.0
        %318 = vmatprep.subr.mxu0 0.0
        %319 = vmatpush1.msra.mxu0 0.0
        %320 = vmatprep.subr.mxu0 0.0
        %321 = vmatpush1.msra.mxu0 0.0
        %322 = vmatprep.subr.mxu0 0.0
        %323 = vmatpush1.msra.mxu0 0.0
        %324 = vmatprep.subr.mxu0 0.0
        %325 = vmatpush1.msra.mxu0 0.0
        %326 = vmatprep.subr.mxu0 0.0
        %327 = vmatpush1.msra.mxu0 0.0
        %328 = vmatprep.subr.mxu0 0.0
        %329 = vmatpush1.msra.mxu0 0.0
        %330 = vmatprep.mubr.f32.mxu0 0.0
        %331 = vmatmul.mubr.f32.gmra.mrb[0].mxu0 %v242
        %v332 = vpop.f32.mrb[0].mxu0
        %v333 = vadd.f32 %v264, %v332
        %v334 = vpop.f32.mrb[0].mxu0
        %335 = vdwg.mxu0
        %336 = vmax.xlane.f32.xlu0 %v333
        %v337 = vpop.xlane.xlu0 %336
        %v338 = vsub.f32 %v333, %v337
        %v339 = vmul.f32 %v338, 1.442695
        %v340 = vpow.pop %v339
        %v341 = vld [vmem:[#allocation7] sm:$0xff]
        %v342 = vld [vmem:[#allocation7 + $0x8] sm:$0xff]
        %v343 = vld [vmem:[#allocation7 + $0x10] sm:$0xff]
        %v344 = vld [vmem:[#allocation7 + $0x18] sm:$0xff]
        %v345 = vld [vmem:[#allocation7 + $0x20] sm:$0xff]
        %v346 = vld [vmem:[#allocation7 + $0x28] sm:$0xff]
        %v347 = vld [vmem:[#allocation7 + $0x30] sm:$0xff]
        %v348 = vld [vmem:[#allocation7 + $0x38] sm:$0xff]
        %v349 = vld [vmem:[#allocation7 + $0x40] sm:$0xff]
        %v350 = vld [vmem:[#allocation7 + $0x48] sm:$0xff]
        %v351 = vld [vmem:[#allocation7 + $0x50] sm:$0xff]
        %v352 = vld [vmem:[#allocation7 + $0x58] sm:$0xff]
        %v353 = vld [vmem:[#allocation7 + $0x60] sm:$0xff]
        %v354 = vld [vmem:[#allocation7 + $0x68] sm:$0xff]
        %v355 = vld [vmem:[#allocation7 + $0x70] sm:$0xff]
        %v356 = vld [vmem:[#allocation7 + $0x78] sm:$0xff]
        %357 = vmatprep.subr.mxu0 0.0
        %v358 = vand.u32 %v341, 4294901760
        %359 = vmatpush1.msra.mxu0 %v358
        %360 = vmatprep.subr.mxu0 0.0
        %v361 = vand.u32 %v342, 4294901760
        %362 = vmatpush1.msra.mxu0 %v361
        %363 = vmatprep.subr.mxu0 0.0
        %v364 = vand.u32 %v343, 4294901760
        %365 = vmatpush1.msra.mxu0 %v364
        %366 = vmatprep.subr.mxu0 0.0
        %v367 = vand.u32 %v344, 4294901760
        %368 = vmatpush1.msra.mxu0 %v367
        %369 = vmatprep.subr.mxu0 0.0
        %v370 = vand.u32 %v345, 4294901760
        %371 = vmatpush1.msra.mxu0 %v370
        %372 = vmatprep.subr.mxu0 0.0
        %v373 = vand.u32 %v346, 4294901760
        %374 = vmatpush1.msra.mxu0 %v373
        %375 = vmatprep.subr.mxu0 0.0
        %v376 = vand.u32 %v347, 4294901760
        %377 = vmatpush1.msra.mxu0 %v376
        %378 = vmatprep.subr.mxu0 0.0
        %v379 = vand.u32 %v348, 4294901760
        %380 = vmatpush1.msra.mxu0 %v379
        %381 = vmatprep.subr.mxu0 0.0
        %v382 = vand.u32 %v349, 4294901760
        %383 = vmatpush1.msra.mxu0 %v382
        %384 = vmatprep.subr.mxu0 0.0
        %v385 = vand.u32 %v350, 4294901760
        %386 = vmatpush1.msra.mxu0 %v385
        %387 = vmatprep.subr.mxu0 0.0
        %v388 = vand.u32 %v351, 4294901760
        %389 = vmatpush1.msra.mxu0 %v388
        %390 = vmatprep.subr.mxu0 0.0
        %v391 = vand.u32 %v352, 4294901760
        %392 = vmatpush1.msra.mxu0 %v391
        %393 = vmatprep.subr.mxu0 0.0
        %v394 = vand.u32 %v353, 4294901760
        %395 = vmatpush1.msra.mxu0 %v394
        %396 = vmatprep.subr.mxu0 0.0
        %v397 = vand.u32 %v354, 4294901760
        %398 = vmatpush1.msra.mxu0 %v397
        %399 = vmatprep.subr.mxu0 0.0
        %v400 = vand.u32 %v355, 4294901760
        %401 = vmatpush1.msra.mxu0 %v400
        %402 = vmatprep.subr.mxu0 0.0
        %v403 = vand.u32 %v356, 4294901760
        %404 = vmatpush1.msra.mxu0 %v403
        %405 = vmatprep.subr.mxu0 0.0
        %406 = vmatpush1.msra.mxu0 0.0
        %407 = vmatprep.subr.mxu0 0.0
        %408 = vmatpush1.msra.mxu0 0.0
        %409 = vmatprep.subr.mxu0 0.0
        %410 = vmatpush1.msra.mxu0 0.0
        %411 = vmatprep.subr.mxu0 0.0
        %412 = vmatpush1.msra.mxu0 0.0
        %413 = vmatprep.subr.mxu0 0.0
        %414 = vmatpush1.msra.mxu0 0.0
        %415 = vmatprep.subr.mxu0 0.0
        %416 = vmatpush1.msra.mxu0 0.0
        %417 = vmatprep.subr.mxu0 0.0
        %418 = vmatpush1.msra.mxu0 0.0
        %419 = vmatprep.subr.mxu0 0.0
        %420 = vmatpush1.msra.mxu0 0.0
        %421 = vmatprep.subr.mxu0 0.0
        %422 = vmatpush1.msra.mxu0 0.0
        %423 = vmatprep.subr.mxu0 0.0
        %424 = vmatpush1.msra.mxu0 0.0
        %425 = vmatprep.subr.mxu0 0.0
        %426 = vmatpush1.msra.mxu0 0.0
        %427 = vmatprep.subr.mxu0 0.0
        %428 = vmatpush1.msra.mxu0 0.0
        %429 = vmatprep.subr.mxu0 0.0
        %430 = vmatpush1.msra.mxu0 0.0
        %431 = vmatprep.subr.mxu0 0.0
        %432 = vmatpush1.msra.mxu0 0.0
        %433 = vmatprep.subr.mxu0 0.0
        %434 = vmatpush1.msra.mxu0 0.0
        %435 = vmatprep.subr.mxu0 0.0
        %436 = vmatpush1.msra.mxu0 0.0
        %437 = vmatprep.mubr.f32.mxu0 0.0
        %v438 = vand.u32 %v340, 4294901760
        %v439 = vsub.f32 %v340, %v438
        %v440 = vand.u32 %v439, 4294901760
        %v441 = vsub.f32 %v439, %v440
        %v442 = vand.u32 %v441, 4294901760
        %443 = vmatmul.mubr.f32.gmra.mrb[0].mxu0 %v442
        %v444 = vpop.f32.mrb[0].mxu0
        %v445 = vadd.f32 0.0, %v444
        %v446 = vpop.f32.mrb[0].mxu0
        %447 = vdwg.mxu0
        %448 = vmatprep.subr.mxu0 0.0
        %v449 = vand.u32 %v341, 4294901760
        %v450 = vsub.f32 %v341, %v449
        %v451 = vand.u32 %v450, 4294901760
        %v452 = vsub.f32 %v450, %v451
        %v453 = vand.u32 %v452, 4294901760
        %454 = vmatpush1.msra.mxu0 %v453
        %455 = vmatprep.subr.mxu0 0.0
        %v456 = vand.u32 %v342, 4294901760
        %v457 = vsub.f32 %v342, %v456
        %v458 = vand.u32 %v457, 4294901760
        %v459 = vsub.f32 %v457, %v458
        %v460 = vand.u32 %v459, 4294901760
        %461 = vmatpush1.msra.mxu0 %v460
        %462 = vmatprep.subr.mxu0 0.0
        %v463 = vand.u32 %v343, 4294901760
        %v464 = vsub.f32 %v343, %v463
        %v465 = vand.u32 %v464, 4294901760
        %v466 = vsub.f32 %v464, %v465
        %v467 = vand.u32 %v466, 4294901760
        %468 = vmatpush1.msra.mxu0 %v467
        %469 = vmatprep.subr.mxu0 0.0
        %v470 = vand.u32 %v344, 4294901760
        %v471 = vsub.f32 %v344, %v470
        %v472 = vand.u32 %v471, 4294901760
        %v473 = vsub.f32 %v471, %v472
        %v474 = vand.u32 %v473, 4294901760
        %475 = vmatpush1.msra.mxu0 %v474
        %476 = vmatprep.subr.mxu0 0.0
        %v477 = vand.u32 %v345, 4294901760
        %v478 = vsub.f32 %v345, %v477
        %v479 = vand.u32 %v478, 4294901760
        %v480 = vsub.f32 %v478, %v479
        %v481 = vand.u32 %v480, 4294901760
        %482 = vmatpush1.msra.mxu0 %v481
        %483 = vmatprep.subr.mxu0 0.0
        %v484 = vand.u32 %v346, 4294901760
        %v485 = vsub.f32 %v346, %v484
        %v486 = vand.u32 %v485, 4294901760
        %v487 = vsub.f32 %v485, %v486
        %v488 = vand.u32 %v487, 4294901760
        %489 = vmatpush1.msra.mxu0 %v488
        %490 = vmatprep.subr.mxu0 0.0
        %v491 = vand.u32 %v347, 4294901760
        %v492 = vsub.f32 %v347, %v491
        %v493 = vand.u32 %v492, 4294901760
        %v494 = vsub.f32 %v492, %v493
        %v495 = vand.u32 %v494, 4294901760
        %496 = vmatpush1.msra.mxu0 %v495
        %497 = vmatprep.subr.mxu0 0.0
        %v498 = vand.u32 %v348, 4294901760
        %v499 = vsub.f32 %v348, %v498
        %v500 = vand.u32 %v499, 4294901760
        %v501 = vsub.f32 %v499, %v500
        %v502 = vand.u32 %v501, 4294901760
        %503 = vmatpush1.msra.mxu0 %v502
        %504 = vmatprep.subr.mxu0 0.0
        %v505 = vand.u32 %v349, 4294901760
        %v506 = vsub.f32 %v349, %v505
        %v507 = vand.u32 %v506, 4294901760
        %v508 = vsub.f32 %v506, %v507
        %v509 = vand.u32 %v508, 4294901760
        %510 = vmatpush1.msra.mxu0 %v509
        %511 = vmatprep.subr.mxu0 0.0
        %v512 = vand.u32 %v350, 4294901760
        %v513 = vsub.f32 %v350, %v512
        %v514 = vand.u32 %v513, 4294901760
        %v515 = vsub.f32 %v513, %v514
        %v516 = vand.u32 %v515, 4294901760
        %517 = vmatpush1.msra.mxu0 %v516
        %518 = vmatprep.subr.mxu0 0.0
        %v519 = vand.u32 %v351, 4294901760
        %v520 = vsub.f32 %v351, %v519
        %v521 = vand.u32 %v520, 4294901760
        %v522 = vsub.f32 %v520, %v521
        %v523 = vand.u32 %v522, 4294901760
        %524 = vmatpush1.msra.mxu0 %v523
        %525 = vmatprep.subr.mxu0 0.0
        %v526 = vand.u32 %v352, 4294901760
        %v527 = vsub.f32 %v352, %v526
        %v528 = vand.u32 %v527, 4294901760
        %v529 = vsub.f32 %v527, %v528
        %v530 = vand.u32 %v529, 4294901760
        %531 = vmatpush1.msra.mxu0 %v530
        %532 = vmatprep.subr.mxu0 0.0
        %v533 = vand.u32 %v353, 4294901760
        %v534 = vsub.f32 %v353, %v533
        %v535 = vand.u32 %v534, 4294901760
        %v536 = vsub.f32 %v534, %v535
        %v537 = vand.u32 %v536, 4294901760
        %538 = vmatpush1.msra.mxu0 %v537
        %539 = vmatprep.subr.mxu0 0.0
        %v540 = vand.u32 %v354, 4294901760
        %v541 = vsub.f32 %v354, %v540
        %v542 = vand.u32 %v541, 4294901760
        %v543 = vsub.f32 %v541, %v542
        %v544 = vand.u32 %v543, 4294901760
        %545 = vmatpush1.msra.mxu0 %v544
        %546 = vmatprep.subr.mxu0 0.0
        %v547 = vand.u32 %v355, 4294901760
        %v548 = vsub.f32 %v355, %v547
        %v549 = vand.u32 %v548, 4294901760
        %v550 = vsub.f32 %v548, %v549
        %v551 = vand.u32 %v550, 4294901760
        %552 = vmatpush1.msra.mxu0 %v551
        %553 = vmatprep.subr.mxu0 0.0
        %v554 = vand.u32 %v356, 4294901760
        %v555 = vsub.f32 %v356, %v554
        %v556 = vand.u32 %v555, 4294901760
        %v557 = vsub.f32 %v555, %v556
        %v558 = vand.u32 %v557, 4294901760
        %559 = vmatpush1.msra.mxu0 %v558
        %560 = vmatprep.subr.mxu0 0.0
        %561 = vmatpush1.msra.mxu0 0.0
        %562 = vmatprep.subr.mxu0 0.0
        %563 = vmatpush1.msra.mxu0 0.0
        %564 = vmatprep.subr.mxu0 0.0
        %565 = vmatpush1.msra.mxu0 0.0
        %566 = vmatprep.subr.mxu0 0.0
        %567 = vmatpush1.msra.mxu0 0.0
        %568 = vmatprep.subr.mxu0 0.0
        %569 = vmatpush1.msra.mxu0 0.0
        %570 = vmatprep.subr.mxu0 0.0
        %571 = vmatpush1.msra.mxu0 0.0
        %572 = vmatprep.subr.mxu0 0.0
        %573 = vmatpush1.msra.mxu0 0.0
        %574 = vmatprep.subr.mxu0 0.0
        %575 = vmatpush1.msra.mxu0 0.0
        %576 = vmatprep.subr.mxu0 0.0
        %577 = vmatpush1.msra.mxu0 0.0
        %578 = vmatprep.subr.mxu0 0.0
        %579 = vmatpush1.msra.mxu0 0.0
        %580 = vmatprep.subr.mxu0 0.0
        %581 = vmatpush1.msra.mxu0 0.0
        %582 = vmatprep.subr.mxu0 0.0
        %583 = vmatpush1.msra.mxu0 0.0
        %584 = vmatprep.subr.mxu0 0.0
        %585 = vmatpush1.msra.mxu0 0.0
        %586 = vmatprep.subr.mxu0 0.0
        %587 = vmatpush1.msra.mxu0 0.0
        %588 = vmatprep.subr.mxu0 0.0
        %589 = vmatpush1.msra.mxu0 0.0
        %590 = vmatprep.subr.mxu0 0.0
        %591 = vmatpush1.msra.mxu0 0.0
        %592 = vmatprep.mubr.f32.mxu0 0.0
        %v593 = vand.u32 %v340, 4294901760
        %594 = vmatmul.mubr.f32.gmra.mrb[0].mxu0 %v593
        %v595 = vpop.f32.mrb[0].mxu0
        %v596 = vadd.f32 %v445, %v595
        %v597 = vpop.f32.mrb[0].mxu0
        %598 = vdwg.mxu0
        %599 = vmatprep.subr.mxu0 0.0
        %v600 = vand.u32 %v341, 4294901760
        %v601 = vsub.f32 %v341, %v600
        %602 = vmatpush1.msra.mxu0 %v601
        %603 = vmatprep.subr.mxu0 0.0
        %v604 = vand.u32 %v342, 4294901760
        %v605 = vsub.f32 %v342, %v604
        %606 = vmatpush1.msra.mxu0 %v605
        %607 = vmatprep.subr.mxu0 0.0
        %v608 = vand.u32 %v343, 4294901760
        %v609 = vsub.f32 %v343, %v608
        %610 = vmatpush1.msra.mxu0 %v609
        %611 = vmatprep.subr.mxu0 0.0
        %v612 = vand.u32 %v344, 4294901760
        %v613 = vsub.f32 %v344, %v612
        %614 = vmatpush1.msra.mxu0 %v613
        %615 = vmatprep.subr.mxu0 0.0
        %v616 = vand.u32 %v345, 4294901760
        %v617 = vsub.f32 %v345, %v616
        %618 = vmatpush1.msra.mxu0 %v617
        %619 = vmatprep.subr.mxu0 0.0
        %v620 = vand.u32 %v346, 4294901760
        %v621 = vsub.f32 %v346, %v620
        %622 = vmatpush1.msra.mxu0 %v621
        %623 = vmatprep.subr.mxu0 0.0
        %v624 = vand.u32 %v347, 4294901760
        %v625 = vsub.f32 %v347, %v624
        %626 = vmatpush1.msra.mxu0 %v625
        %627 = vmatprep.subr.mxu0 0.0
        %v628 = vand.u32 %v348, 4294901760
        %v629 = vsub.f32 %v348, %v628
        %630 = vmatpush1.msra.mxu0 %v629
        %631 = vmatprep.subr.mxu0 0.0
        %v632 = vand.u32 %v349, 4294901760
        %v633 = vsub.f32 %v349, %v632
        %634 = vmatpush1.msra.mxu0 %v633
        %635 = vmatprep.subr.mxu0 0.0
        %v636 = vand.u32 %v350, 4294901760
        %v637 = vsub.f32 %v350, %v636
        %638 = vmatpush1.msra.mxu0 %v637
        %639 = vmatprep.subr.mxu0 0.0
        %v640 = vand.u32 %v351, 4294901760
        %v641 = vsub.f32 %v351, %v640
        %642 = vmatpush1.msra.mxu0 %v641
        %643 = vmatprep.subr.mxu0 0.0
        %v644 = vand.u32 %v352, 4294901760
        %v645 = vsub.f32 %v352, %v644
        %646 = vmatpush1.msra.mxu0 %v645
        %647 = vmatprep.subr.mxu0 0.0
        %v648 = vand.u32 %v353, 4294901760
        %v649 = vsub.f32 %v353, %v648
        %650 = vmatpush1.msra.mxu0 %v649
        %651 = vmatprep.subr.mxu0 0.0
        %v652 = vand.u32 %v354, 4294901760
        %v653 = vsub.f32 %v354, %v652
        %654 = vmatpush1.msra.mxu0 %v653
        %655 = vmatprep.subr.mxu0 0.0
        %v656 = vand.u32 %v355, 4294901760
        %v657 = vsub.f32 %v355, %v656
        %658 = vmatpush1.msra.mxu0 %v657
        %659 = vmatprep.subr.mxu0 0.0
        %v660 = vand.u32 %v356, 4294901760
        %v661 = vsub.f32 %v356, %v660
        %662 = vmatpush1.msra.mxu0 %v661
        %663 = vmatprep.subr.mxu0 0.0
        %664 = vmatpush1.msra.mxu0 0.0
        %665 = vmatprep.subr.mxu0 0.0
        %666 = vmatpush1.msra.mxu0 0.0
        %667 = vmatprep.subr.mxu0 0.0
        %668 = vmatpush1.msra.mxu0 0.0
        %669 = vmatprep.subr.mxu0 0.0
        %670 = vmatpush1.msra.mxu0 0.0
        %671 = vmatprep.subr.mxu0 0.0
        %672 = vmatpush1.msra.mxu0 0.0
        %673 = vmatprep.subr.mxu0 0.0
        %674 = vmatpush1.msra.mxu0 0.0
        %675 = vmatprep.subr.mxu0 0.0
        %676 = vmatpush1.msra.mxu0 0.0
        %677 = vmatprep.subr.mxu0 0.0
        %678 = vmatpush1.msra.mxu0 0.0
        %679 = vmatprep.subr.mxu0 0.0
        %680 = vmatpush1.msra.mxu0 0.0
        %681 = vmatprep.subr.mxu0 0.0
        %682 = vmatpush1.msra.mxu0 0.0
        %683 = vmatprep.subr.mxu0 0.0
        %684 = vmatpush1.msra.mxu0 0.0
        %685 = vmatprep.subr.mxu0 0.0
        %686 = vmatpush1.msra.mxu0 0.0
        %687 = vmatprep.subr.mxu0 0.0
        %688 = vmatpush1.msra.mxu0 0.0
        %689 = vmatprep.subr.mxu0 0.0
        %690 = vmatpush1.msra.mxu0 0.0
        %691 = vmatprep.subr.mxu0 0.0
        %692 = vmatpush1.msra.mxu0 0.0
        %693 = vmatprep.subr.mxu0 0.0
        %694 = vmatpush1.msra.mxu0 0.0
        %695 = vmatprep.mubr.f32.mxu0 0.0
        %v696 = vand.u32 %v340, 4294901760
        %v697 = vsub.f32 %v340, %v696
        %698 = vmatmul.mubr.f32.gmra.mrb[0].mxu0 %v697
        %v699 = vpop.f32.mrb[0].mxu0
        %v700 = vadd.f32 %v596, %v699
        %v701 = vpop.f32.mrb[0].mxu0
        %702 = vdwg.mxu0
        %703 = vmatprep.subr.mxu0 0.0
        %v704 = vand.u32 %v341, 4294901760
        %705 = vmatpush1.msra.mxu0 %v704
        %706 = vmatprep.subr.mxu0 0.0
        %v707 = vand.u32 %v342, 4294901760
        %708 = vmatpush1.msra.mxu0 %v707
        %709 = vmatprep.subr.mxu0 0.0
        %v710 = vand.u32 %v343, 4294901760
        %711 = vmatpush1.msra.mxu0 %v710
        %712 = vmatprep.subr.mxu0 0.0
        %v713 = vand.u32 %v344, 4294901760
        %714 = vmatpush1.msra.mxu0 %v713
        %715 = vmatprep.subr.mxu0 0.0
        %v716 = vand.u32 %v345, 4294901760
        %717 = vmatpush1.msra.mxu0 %v716
        %718 = vmatprep.subr.mxu0 0.0
        %v719 = vand.u32 %v346, 4294901760
        %720 = vmatpush1.msra.mxu0 %v719
        %721 = vmatprep.subr.mxu0 0.0
        %v722 = vand.u32 %v347, 4294901760
        %723 = vmatpush1.msra.mxu0 %v722
        %724 = vmatprep.subr.mxu0 0.0
        %v725 = vand.u32 %v348, 4294901760
        %726 = vmatpush1.msra.mxu0 %v725
        %727 = vmatprep.subr.mxu0 0.0
        %v728 = vand.u32 %v349, 4294901760
        %729 = vmatpush1.msra.mxu0 %v728
        %730 = vmatprep.subr.mxu0 0.0
        %v731 = vand.u32 %v350, 4294901760
        %732 = vmatpush1.msra.mxu0 %v731
        %733 = vmatprep.subr.mxu0 0.0
        %v734 = vand.u32 %v351, 4294901760
        %735 = vmatpush1.msra.mxu0 %v734
        %736 = vmatprep.subr.mxu0 0.0
        %v737 = vand.u32 %v352, 4294901760
        %738 = vmatpush1.msra.mxu0 %v737
        %739 = vmatprep.subr.mxu0 0.0
        %v740 = vand.u32 %v353, 4294901760
        %741 = vmatpush1.msra.mxu0 %v740
        %742 = vmatprep.subr.mxu0 0.0
        %v743 = vand.u32 %v354, 4294901760
        %744 = vmatpush1.msra.mxu0 %v743
        %745 = vmatprep.subr.mxu0 0.0
        %v746 = vand.u32 %v355, 4294901760
        %747 = vmatpush1.msra.mxu0 %v746
        %748 = vmatprep.subr.mxu0 0.0
        %v749 = vand.u32 %v356, 4294901760
        %750 = vmatpush1.msra.mxu0 %v749
        %751 = vmatprep.subr.mxu0 0.0
        %752 = vmatpush1.msra.mxu0 0.0
        %753 = vmatprep.subr.mxu0 0.0
        %754 = vmatpush1.msra.mxu0 0.0
        %755 = vmatprep.subr.mxu0 0.0
        %756 = vmatpush1.msra.mxu0 0.0
        %757 = vmatprep.subr.mxu0 0.0
        %758 = vmatpush1.msra.mxu0 0.0
        %759 = vmatprep.subr.mxu0 0.0
        %760 = vmatpush1.msra.mxu0 0.0
        %761 = vmatprep.subr.mxu0 0.0
        %762 = vmatpush1.msra.mxu0 0.0
        %763 = vmatprep.subr.mxu0 0.0
        %764 = vmatpush1.msra.mxu0 0.0
        %765 = vmatprep.subr.mxu0 0.0
        %766 = vmatpush1.msra.mxu0 0.0
        %767 = vmatprep.subr.mxu0 0.0
        %768 = vmatpush1.msra.mxu0 0.0
        %769 = vmatprep.subr.mxu0 0.0
        %770 = vmatpush1.msra.mxu0 0.0
        %771 = vmatprep.subr.mxu0 0.0
        %772 = vmatpush1.msra.mxu0 0.0
        %773 = vmatprep.subr.mxu0 0.0
        %774 = vmatpush1.msra.mxu0 0.0
        %775 = vmatprep.subr.mxu0 0.0
        %776 = vmatpush1.msra.mxu0 0.0
        %777 = vmatprep.subr.mxu0 0.0
        %778 = vmatpush1.msra.mxu0 0.0
        %779 = vmatprep.subr.mxu0 0.0
        %780 = vmatpush1.msra.mxu0 0.0
        %781 = vmatprep.subr.mxu0 0.0
        %782 = vmatpush1.msra.mxu0 0.0
        %783 = vmatprep.mubr.f32.mxu0 0.0
        %v784 = vand.u32 %v340, 4294901760
        %v785 = vsub.f32 %v340, %v784
        %v786 = vand.u32 %v785, 4294901760
        %787 = vmatmul.mubr.f32.gmra.mrb[0].mxu0 %v786
        %v788 = vpop.f32.mrb[0].mxu0
        %v789 = vadd.f32 %v700, %v788
        %v790 = vpop.f32.mrb[0].mxu0
        %791 = vdwg.mxu0
        %792 = vmatprep.subr.mxu0 0.0
        %v793 = vand.u32 %v341, 4294901760
        %v794 = vsub.f32 %v341, %v793
        %v795 = vand.u32 %v794, 4294901760
        %796 = vmatpush1.msra.mxu0 %v795
        %797 = vmatprep.subr.mxu0 0.0
        %v798 = vand.u32 %v342, 4294901760
        %v799 = vsub.f32 %v342, %v798
        %v800 = vand.u32 %v799, 4294901760
        %801 = vmatpush1.msra.mxu0 %v800
        %802 = vmatprep.subr.mxu0 0.0
        %v803 = vand.u32 %v343, 4294901760
        %v804 = vsub.f32 %v343, %v803
        %v805 = vand.u32 %v804, 4294901760
        %806 = vmatpush1.msra.mxu0 %v805
        %807 = vmatprep.subr.mxu0 0.0
        %v808 = vand.u32 %v344, 4294901760
        %v809 = vsub.f32 %v344, %v808
        %v810 = vand.u32 %v809, 4294901760
        %811 = vmatpush1.msra.mxu0 %v810
        %812 = vmatprep.subr.mxu0 0.0
        %v813 = vand.u32 %v345, 4294901760
        %v814 = vsub.f32 %v345, %v813
        %v815 = vand.u32 %v814, 4294901760
        %816 = vmatpush1.msra.mxu0 %v815
        %817 = vmatprep.subr.mxu0 0.0
        %v818 = vand.u32 %v346, 4294901760
        %v819 = vsub.f32 %v346, %v818
        %v820 = vand.u32 %v819, 4294901760
        %821 = vmatpush1.msra.mxu0 %v820
        %822 = vmatprep.subr.mxu0 0.0
        %v823 = vand.u32 %v347, 4294901760
        %v824 = vsub.f32 %v347, %v823
        %v825 = vand.u32 %v824, 4294901760
        %826 = vmatpush1.msra.mxu0 %v825
        %827 = vmatprep.subr.mxu0 0.0
        %v828 = vand.u32 %v348, 4294901760
        %v829 = vsub.f32 %v348, %v828
        %v830 = vand.u32 %v829, 4294901760
        %831 = vmatpush1.msra.mxu0 %v830
        %832 = vmatprep.subr.mxu0 0.0
        %v833 = vand.u32 %v349, 4294901760
        %v834 = vsub.f32 %v349, %v833
        %v835 = vand.u32 %v834, 4294901760
        %836 = vmatpush1.msra.mxu0 %v835
        %837 = vmatprep.subr.mxu0 0.0
        %v838 = vand.u32 %v350, 4294901760
        %v839 = vsub.f32 %v350, %v838
        %v840 = vand.u32 %v839, 4294901760
        %841 = vmatpush1.msra.mxu0 %v840
        %842 = vmatprep.subr.mxu0 0.0
        %v843 = vand.u32 %v351, 4294901760
        %v844 = vsub.f32 %v351, %v843
        %v845 = vand.u32 %v844, 4294901760
        %846 = vmatpush1.msra.mxu0 %v845
        %847 = vmatprep.subr.mxu0 0.0
        %v848 = vand.u32 %v352, 4294901760
        %v849 = vsub.f32 %v352, %v848
        %v850 = vand.u32 %v849, 4294901760
        %851 = vmatpush1.msra.mxu0 %v850
        %852 = vmatprep.subr.mxu0 0.0
        %v853 = vand.u32 %v353, 4294901760
        %v854 = vsub.f32 %v353, %v853
        %v855 = vand.u32 %v854, 4294901760
        %856 = vmatpush1.msra.mxu0 %v855
        %857 = vmatprep.subr.mxu0 0.0
        %v858 = vand.u32 %v354, 4294901760
        %v859 = vsub.f32 %v354, %v858
        %v860 = vand.u32 %v859, 4294901760
        %861 = vmatpush1.msra.mxu0 %v860
        %862 = vmatprep.subr.mxu0 0.0
        %v863 = vand.u32 %v355, 4294901760
        %v864 = vsub.f32 %v355, %v863
        %v865 = vand.u32 %v864, 4294901760
        %866 = vmatpush1.msra.mxu0 %v865
        %867 = vmatprep.subr.mxu0 0.0
        %v868 = vand.u32 %v356, 4294901760
        %v869 = vsub.f32 %v356, %v868
        %v870 = vand.u32 %v869, 4294901760
        %871 = vmatpush1.msra.mxu0 %v870
        %872 = vmatprep.subr.mxu0 0.0
        %873 = vmatpush1.msra.mxu0 0.0
        %874 = vmatprep.subr.mxu0 0.0
        %875 = vmatpush1.msra.mxu0 0.0
        %876 = vmatprep.subr.mxu0 0.0
        %877 = vmatpush1.msra.mxu0 0.0
        %878 = vmatprep.subr.mxu0 0.0
        %879 = vmatpush1.msra.mxu0 0.0
        %880 = vmatprep.subr.mxu0 0.0
        %881 = vmatpush1.msra.mxu0 0.0
        %882 = vmatprep.subr.mxu0 0.0
        %883 = vmatpush1.msra.mxu0 0.0
        %884 = vmatprep.subr.mxu0 0.0
        %885 = vmatpush1.msra.mxu0 0.0
        %886 = vmatprep.subr.mxu0 0.0
        %887 = vmatpush1.msra.mxu0 0.0
        %888 = vmatprep.subr.mxu0 0.0
        %889 = vmatpush1.msra.mxu0 0.0
        %890 = vmatprep.subr.mxu0 0.0
        %891 = vmatpush1.msra.mxu0 0.0
        %892 = vmatprep.subr.mxu0 0.0
        %893 = vmatpush1.msra.mxu0 0.0
        %894 = vmatprep.subr.mxu0 0.0
        %895 = vmatpush1.msra.mxu0 0.0
        %896 = vmatprep.subr.mxu0 0.0
        %897 = vmatpush1.msra.mxu0 0.0
        %898 = vmatprep.subr.mxu0 0.0
        %899 = vmatpush1.msra.mxu0 0.0
        %900 = vmatprep.subr.mxu0 0.0
        %901 = vmatpush1.msra.mxu0 0.0
        %902 = vmatprep.subr.mxu0 0.0
        %903 = vmatpush1.msra.mxu0 0.0
        %904 = vmatprep.mubr.f32.mxu0 0.0
        %v905 = vand.u32 %v340, 4294901760
        %906 = vmatmul.mubr.f32.gmra.mrb[0].mxu0 %v905
        %v907 = vpop.f32.mrb[0].mxu0
        %v908 = vadd.f32 %v789, %v907
        %v909 = vpop.f32.mrb[0].mxu0
        %910 = vdwg.mxu0
        %911 = vmatprep.subr.mxu0 0.0
        %v912 = vand.u32 %v341, 4294901760
        %913 = vmatpush1.msra.mxu0 %v912
        %914 = vmatprep.subr.mxu0 0.0
        %v915 = vand.u32 %v342, 4294901760
        %916 = vmatpush1.msra.mxu0 %v915
        %917 = vmatprep.subr.mxu0 0.0
        %v918 = vand.u32 %v343, 4294901760
        %919 = vmatpush1.msra.mxu0 %v918
        %920 = vmatprep.subr.mxu0 0.0
        %v921 = vand.u32 %v344, 4294901760
        %922 = vmatpush1.msra.mxu0 %v921
        %923 = vmatprep.subr.mxu0 0.0
        %v924 = vand.u32 %v345, 4294901760
        %925 = vmatpush1.msra.mxu0 %v924
        %926 = vmatprep.subr.mxu0 0.0
        %v927 = vand.u32 %v346, 4294901760
        %928 = vmatpush1.msra.mxu0 %v927
        %929 = vmatprep.subr.mxu0 0.0
        %v930 = vand.u32 %v347, 4294901760
        %931 = vmatpush1.msra.mxu0 %v930
        %932 = vmatprep.subr.mxu0 0.0
        %v933 = vand.u32 %v348, 4294901760
        %934 = vmatpush1.msra.mxu0 %v933
        %935 = vmatprep.subr.mxu0 0.0
        %v936 = vand.u32 %v349, 4294901760
        %937 = vmatpush1.msra.mxu0 %v936
        %938 = vmatprep.subr.mxu0 0.0
        %v939 = vand.u32 %v350, 4294901760
        %940 = vmatpush1.msra.mxu0 %v939
        %941 = vmatprep.subr.mxu0 0.0
        %v942 = vand.u32 %v351, 4294901760
        %943 = vmatpush1.msra.mxu0 %v942
        %944 = vmatprep.subr.mxu0 0.0
        %v945 = vand.u32 %v352, 4294901760
        %946 = vmatpush1.msra.mxu0 %v945
        %947 = vmatprep.subr.mxu0 0.0
        %v948 = vand.u32 %v353, 4294901760
        %949 = vmatpush1.msra.mxu0 %v948
        %950 = vmatprep.subr.mxu0 0.0
        %v951 = vand.u32 %v354, 4294901760
        %952 = vmatpush1.msra.mxu0 %v951
        %953 = vmatprep.subr.mxu0 0.0
        %v954 = vand.u32 %v355, 4294901760
        %955 = vmatpush1.msra.mxu0 %v954
        %956 = vmatprep.subr.mxu0 0.0
        %v957 = vand.u32 %v356, 4294901760
        %958 = vmatpush1.msra.mxu0 %v957
        %959 = vmatprep.subr.mxu0 0.0
        %960 = vmatpush1.msra.mxu0 0.0
        %961 = vmatprep.subr.mxu0 0.0
        %962 = vmatpush1.msra.mxu0 0.0
        %963 = vmatprep.subr.mxu0 0.0
        %964 = vmatpush1.msra.mxu0 0.0
        %965 = vmatprep.subr.mxu0 0.0
        %966 = vmatpush1.msra.mxu0 0.0
        %967 = vmatprep.subr.mxu0 0.0
        %968 = vmatpush1.msra.mxu0 0.0
        %969 = vmatprep.subr.mxu0 0.0
        %970 = vmatpush1.msra.mxu0 0.0
        %971 = vmatprep.subr.mxu0 0.0
        %972 = vmatpush1.msra.mxu0 0.0
        %973 = vmatprep.subr.mxu0 0.0
        %974 = vmatpush1.msra.mxu0 0.0
        %975 = vmatprep.subr.mxu0 0.0
        %976 = vmatpush1.msra.mxu0 0.0
        %977 = vmatprep.subr.mxu0 0.0
        %978 = vmatpush1.msra.mxu0 0.0
        %979 = vmatprep.subr.mxu0 0.0
        %980 = vmatpush1.msra.mxu0 0.0
        %981 = vmatprep.subr.mxu0 0.0
        %982 = vmatpush1.msra.mxu0 0.0
        %983 = vmatprep.subr.mxu0 0.0
        %984 = vmatpush1.msra.mxu0 0.0
        %985 = vmatprep.subr.mxu0 0.0
        %986 = vmatpush1.msra.mxu0 0.0
        %987 = vmatprep.subr.mxu0 0.0
        %988 = vmatpush1.msra.mxu0 0.0
        %989 = vmatprep.subr.mxu0 0.0
        %990 = vmatpush1.msra.mxu0 0.0
        %991 = vmatprep.mubr.f32.mxu0 0.0
        %v992 = vand.u32 %v340, 4294901760
        %993 = vmatmul.mubr.f32.gmra.mrb[0].mxu0 %v992
        %v994 = vpop.f32.mrb[0].mxu0
        %v995 = vadd.f32 %v908, %v994
        %v996 = vpop.f32.mrb[0].mxu0
        %997 = vdwg.mxu0
        %v998 = vrcp.pop %v995
        %v999 = vmul.f32 %v340, %v998
        %v1000 = vmul.f32 %v242, %v999
        %1001 = vst [vmem:[%s241] sm:$0xff] %v1000
        %s1002 = sand.u32 %s119, 1
        %s1003 = scalar_lea.sflag [#allocation4], %s1002
        %s1004 = sand.u32 %s119, 1
        %s1005 = smul.addr %s1004, 8
        %s1006 = scalar_lea.vmem [#allocation8], %s1005
        // Predicated region
        $region49: #{tpu_custom_call.1} parent=35 // pred_check
          %p1007 = pneg %p129
        $region50: #{tpu_custom_call.1} parent=35 // pred_check_branch
          %1009 = sbr.rel (%p1007) target = $region52
        $region51: #{tpu_custom_call.1} parent=35 // pred_region
          %s1011 = ssub.s32 128, 128
          %1012 = vsyncadd %s1003, %s1011
          %s1013 = smul.addr %s22, 128
          %s1014 = scalar_lea.hbm %s4, %s1013
          %s1016 = sshll.u32 %s1006, 4
          %s1017 = int_to_ptr.vmem [resolvable:$true] %s1016
          %1019 = dma.vmem_to_hbm [thread:$0]  %s1017, 128, %s1014, %s1003
        $region52: #{tpu_custom_call.1} parent=35 // pred_fallthru
          _
      $region36: #{tpu_custom_call.1} parent=5 // pred_fallthru
        _
      %p1020 = scmp.le.s32.totalorder 2, %s17
      // Predicated region
      $region53: #{tpu_custom_call.1} parent=5 // pred_check
        %p1021 = pneg %p1020
      $region54: #{tpu_custom_call.1} parent=5 // pred_check_branch
        %1023 = sbr.rel (%p1021) target = $region56
      $region55: #{tpu_custom_call.1} parent=5 // pred_region
        %s1024 = ssub.s32 %s17, 2
        // Predicated region
        $region57: #{tpu_custom_call.1} parent=55 // pred_check
          %p1025 = pneg %p135
        $region58: #{tpu_custom_call.1} parent=55 // pred_check_branch
          %1027 = sbr.rel (%p1025) target = $region60
        $region59: #{tpu_custom_call.1} parent=55 // pred_region
          %s1028 = sand.u32 %s120, 1
          %s1029 = scalar_lea.sflag [#allocation4], %s1028
          %s1030 = sand.u32 %s120, 1
          %s1031 = smul.addr %s1030, 8
          %s1032 = scalar_lea.vmem [#allocation8], %s1031
          %1033 = dma.done %s1029, 128
        $region60: #{tpu_custom_call.1} parent=55 // pred_fallthru
          _
      $region56: #{tpu_custom_call.1} parent=5 // pred_fallthru
        _
    $region6: #{tpu_custom_call.1} parent=1 // loop_footer
      %s21 = sadd.s32 1, %s17
    $region7: #{tpu_custom_call.1} parent=1 // loop_footer_branch
      %16 = sbr.rel target = $region3
    $region8: #{tpu_custom_call.1} parent=1 // loop_exit
      _
    %1034 = vsyncpa [#allocation3], 1
    %s1035 = scalar_lea.sflag [#allocation3], 1
    %1036 = vsyncpa %s1035, 1
    %1037 = vsyncpa [#allocation6], 1
    %1038 = vsyncpa [#allocation4], 1
    %s1039 = scalar_lea.sflag [#allocation4], 1
    %1040 = vsyncpa %s1039, 1

// kernel: tpu_custom_call.1
$region0: #{tpu_custom_call.1}
  #allocation0 [shape = 'u32[]', space=smem, size = 0x4, offset = 0x4, fixed_abs, tag = 'smem constant byte address 0x4 - core index']
  #allocation1 [shape = 'u32[144,128]{1,0:T(1,128)}', space=vmem, size = 0x12000, scoped, tag = 'internal scratch']
  %s0 = inlined_call_operand.hbm [shape: f32[16,128], index: 0, kind: input, shape index: {}]
  %s1 = inlined_call_operand.hbm [shape: f32[128,128], index: 1, kind: input, shape index: {}]
  %s2 = inlined_call_operand.vmem [shape: f32[1,128], index: 2, kind: input, shape index: {}]
  %s3 = inlined_call_operand.hbm [shape: f32[128,128], index: 3, kind: input, shape index: {}]
  %s4 = inlined_call_operand.hbm [shape: f32[16,128], index: 4, kind: output, shape index: {}]
  %s5 = sld [smem:[#allocation0]]
  $region61: #{tpu_custom_call.1} parent=0
    _
  %s7 = ssub.s32 1, %s5
  %s8 = scalar_select 0, %s7, %s5
  $region1: #{tpu_custom_call.1} parent=0
    #allocation2 [shape = 'u8[8192]{0}', space=vmem, size = 0x2000, scoped, tag = 'input window, operand 0']
    #allocation3 [shape = 's32[2]{0}', space=sflag, size = 0x8, scoped, tag = 'scoped memory for tpu_custom_call.1']
    #allocation4 [shape = 's32[2]{0}', space=sflag, size = 0x8, scoped, tag = 'scoped memory for tpu_custom_call.1']
    #allocation5 [shape = 'u8[65536]{0}', space=vmem, size = 0x10000, scoped, tag = 'input window, operand 1, single buffered']
    #allocation6 [shape = 's32[1]{0}', space=sflag, size = 0x4, scoped, tag = 'scoped memory for tpu_custom_call.1']
    #allocation7 [shape = 'u8[65536]{0}', space=vmem, size = 0x10000, scoped, tag = 'input window, operand 3, single buffered']
    #allocation8 [shape = 'u8[8192]{0}', space=vmem, size = 0x2000, scoped, tag = 'output window, operand 0']
    %9 = vsyncpa [#allocation3], 0
    %s10 = scalar_lea.sflag [#allocation3], 1
    %11 = vsyncpa %s10, 0
    %12 = vsyncpa [#allocation6], 0
    %13 = vsyncpa [#allocation4], 0
    %s14 = scalar_lea.sflag [#allocation4], 1
    %15 = vsyncpa %s14, 0
    loop: start=0, step=1, limit=4
    $region2: #{tpu_custom_call.1} parent=1 // loop_pre_header
      _
    $region3: #{tpu_custom_call.1} parent=1 // loop_header
      %s17 = sphi 0, %s21
      %p18 = scmp.ge.s32.totalorder %s17, 4
      %s27 = sphi 0, %s29
      %s30 = sphi 0, %s27
      %s31 = sphi 0, %s30
      %s47 = sphi 0, %s31
      %s51 = sphi 0, %s51
      %s53 = sphi 0, %s51
      %s54 = sphi 0, %s53
      %s68 = sphi 0, %s54
      %s72 = sphi 0, %s72
      %s74 = sphi 0, %s72
      %s75 = sphi 0, %s74
      %s89 = sphi 0, %s75
      %s93 = sphi 0, %s93
      %s95 = sphi 0, %s93
      %s96 = sphi 0, %s95
      %s110 = sphi 0, %s96
      %s116 = sphi 0, %s118
      %s119 = sphi 0, %s116
      %s120 = sphi 0, %s119
      %s136 = sphi 0, %s120
    $region4: #{tpu_custom_call.1} parent=1 // loop_header_branch
      %20 = sbr.rel (%p18) target = $region8
    $region5: #{tpu_custom_call.1} parent=1 // loop_body
      %s22 = ssub.s32 %s17, 1
      %s23 = ssub.s32 %s17, 2
      %s24 = sadd.s32 %s17, 1
      %s25 = ssub.s32 %s17, %s24
      %p26 = scmp.eq.s32.totalorder %s25, 0
      %s28 = sadd.s32 %s27, 1
      %s29 = scalar_select %p26, %s27, %s28
      %p32 = pneg %p26
      %p33 = scmp.eq.s32.totalorder %s17, 1
      %p34 = por %p32, %p33
      %p35 = scmp.ne.s32.totalorder %s27, %s30
      %p36 = scmp.eq.s32.totalorder %s17, 0
      %p37 = por %p35, %p36
      %p38 = scmp.ne.s32.totalorder %s27, %s30
      %p39 = scmp.eq.s32.totalorder %s22, 1
      %p40 = por %p38, %p39
      %p41 = scmp.ne.s32.totalorder %s30, %s31
      %p42 = scmp.eq.s32.totalorder %s22, 0
      %p43 = por %p41, %p42
      %p44 = scmp.ne.s32.totalorder %s30, %s31
      %p45 = scmp.eq.s32.totalorder %s23, 1
      %p46 = por %p44, %p45
      %p48 = scmp.ne.s32.totalorder %s31, %s47
      %p49 = scmp.eq.s32.totalorder %s23, 0
      %p50 = por %p48, %p49
      %s52 = sadd.s32 %s51, 1
      %p55 = scmp.eq.s32.totalorder %s17, 1
      %p56 = scmp.ne.s32.totalorder %s51, %s53
      %p57 = scmp.eq.s32.totalorder %s17, 0
      %p58 = por %p56, %p57
      %p59 = scmp.ne.s32.totalorder %s51, %s53
      %p60 = scmp.eq.s32.totalorder %s22, 1
      %p61 = por %p59, %p60
      %p62 = scmp.ne.s32.totalorder %s53, %s54
      %p63 = scmp.eq.s32.totalorder %s22, 0
      %p64 = por %p62, %p63
      %p65 = scmp.ne.s32.totalorder %s53, %s54
      %p66 = scmp.eq.s32.totalorder %s23, 1
      %p67 = por %p65, %p66
      %p69 = scmp.ne.s32.totalorder %s54, %s68
      %p70 = scmp.eq.s32.totalorder %s23, 0
      %p71 = por %p69, %p70
      %s73 = sadd.s32 %s72, 1
      %p76 = scmp.eq.s32.totalorder %s17, 1
      %p77 = scmp.ne.s32.totalorder %s72, %s74
      %p78 = scmp.eq.s32.totalorder %s17, 0
      %p79 = por %p77, %p78
      %p80 = scmp.ne.s32.totalorder %s72, %s74
      %p81 = scmp.eq.s32.totalorder %s22, 1
      %p82 = por %p80, %p81
      %p83 = scmp.ne.s32.totalorder %s74, %s75
      %p84 = scmp.eq.s32.totalorder %s22, 0
      %p85 = por %p83, %p84
      %p86 = scmp.ne.s32.totalorder %s74, %s75
      %p87 = scmp.eq.s32.totalorder %s23, 1
      %p88 = por %p86, %p87
      %p90 = scmp.ne.s32.totalorder %s75, %s89
      %p91 = scmp.eq.s32.totalorder %s23, 0
      %p92 = por %p90, %p91
      %s94 = sadd.s32 %s93, 1
      %p97 = scmp.eq.s32.totalorder %s17, 1
      %p98 = scmp.ne.s32.totalorder %s93, %s95
      %p99 = scmp.eq.s32.totalorder %s17, 0
      %p100 = por %p98, %p99
      %p101 = scmp.ne.s32.totalorder %s93, %s95
      %p102 = scmp.eq.s32.totalorder %s22, 1
      %p103 = por %p101, %p102
      %p104 = scmp.ne.s32.totalorder %s95, %s96
      %p105 = scmp.eq.s32.totalorder %s22, 0
      %p106 = por %p104, %p105
      %p107 = scmp.ne.s32.totalorder %s95, %s96
      %p108 = scmp.eq.s32.totalorder %s23, 1
      %p109 = por %p107, %p108
      %p111 = scmp.ne.s32.totalorder %s96, %s110
      %p112 = scmp.eq.s32.totalorder %s23, 0
      %p113 = por %p111, %p112
      %s114 = ssub.s32 %s17, %s24
      %p115 = scmp.eq.s32.totalorder %s114, 0
      %s117 = sadd.s32 %s116, 1
      %s118 = scalar_select %p115, %s116, %s117
      %p121 = pneg %p115
      %p122 = scmp.eq.s32.totalorder %s17, 1
      %p123 = por %p121, %p122
      %p124 = scmp.ne.s32.totalorder %s116, %s119
      %p125 = scmp.eq.s32.totalorder %s17, 0
      %p126 = por %p124, %p125
      %p127 = scmp.ne.s32.totalorder %s116, %s119
      %p128 = scmp.eq.s32.totalorder %s22, 1
      %p129 = por %p127, %p128
      %p130 = scmp.ne.s32.totalorder %s119, %s120
      %p131 = scmp.eq.s32.totalorder %s22, 0
      %p132 = por %p130, %p131
      %p133 = scmp.ne.s32.totalorder %s119, %s120
      %p134 = scmp.eq.s32.totalorder %s23, 1
      %p135 = por %p133, %p134
      %p137 = scmp.ne.s32.totalorder %s120, %s136
      %p138 = scmp.eq.s32.totalorder %s23, 0
      %p139 = por %p137, %p138
      %p140 = scmp.le.s32.totalorder 1, %s17
      %p141 = scmp.lt.s32.totalorder %s17, 3
      %p142 = pnand %p140, %p141
      %p143 = pneg %p142
      // Predicated region
      $region9: #{tpu_custom_call.1} parent=5 // pred_check
        _
      $region10: #{tpu_custom_call.1} parent=5 // pred_check_branch
        %145 = sbr.rel (%p142) target = $region12
      $region11: #{tpu_custom_call.1} parent=5 // pred_region
        %s146 = ssub.s32 %s17, 1
        // Predicated region
        $region13: #{tpu_custom_call.1} parent=11 // pred_check
          %p147 = pneg %p64
        $region14: #{tpu_custom_call.1} parent=11 // pred_check_branch
          %149 = sbr.rel (%p147) target = $region16
        $region15: #{tpu_custom_call.1} parent=11 // pred_region
          %s151 = ssub.s32 2048, 2048
          %152 = vsyncadd [#allocation6], %s151
          %s153 = sshll.u32 [#allocation5], 4
          %s154 = int_to_ptr.vmem [resolvable:$true] %s153
          %159 = dma.hbm_to_vmem [thread:$0]  %s1, 2048, %s154, [#allocation6], 128, 128, 8
        $region16: #{tpu_custom_call.1} parent=11 // pred_fallthru
          _
        // Predicated region
        $region17: #{tpu_custom_call.1} parent=11 // pred_check
          %p160 = pneg %p85
        $region18: #{tpu_custom_call.1} parent=11 // pred_check_branch
          %162 = sbr.rel (%p160) target = $region20
        $region19: #{tpu_custom_call.1} parent=11 // pred_region
          _
        $region20: #{tpu_custom_call.1} parent=11 // pred_fallthru
          _
        // Predicated region
        $region21: #{tpu_custom_call.1} parent=11 // pred_check
          %p163 = pneg %p106
        $region22: #{tpu_custom_call.1} parent=11 // pred_check_branch
          %165 = sbr.rel (%p163) target = $region24
        $region23: #{tpu_custom_call.1} parent=11 // pred_region
          %s167 = ssub.s32 2048, 2048
          %168 = vsyncadd [#allocation6], %s167
          %s169 = sshll.u32 [#allocation7], 4
          %s170 = int_to_ptr.vmem [resolvable:$true] %s169
          %175 = dma.hbm_to_vmem [thread:$0]  %s3, 2048, %s170, [#allocation6], 128, 128, 8
        $region24: #{tpu_custom_call.1} parent=11 // pred_fallthru
          _
      $region12: #{tpu_custom_call.1} parent=5 // pred_fallthru
        _
      %p176 = scmp.lt.s32.totalorder %s17, 2
      // Predicated region
      $region25: #{tpu_custom_call.1} parent=5 // pred_check
        %p177 = pneg %p176
      $region26: #{tpu_custom_call.1} parent=5 // pred_check_branch
        %179 = sbr.rel (%p177) target = $region28
      $region27: #{tpu_custom_call.1} parent=5 // pred_region
        // Predicated region
        $region29: #{tpu_custom_call.1} parent=27 // pred_check
          %p180 = pneg %p37
        $region30: #{tpu_custom_call.1} parent=27 // pred_check_branch
          %182 = sbr.rel (%p180) target = $region32
        $region31: #{tpu_custom_call.1} parent=27 // pred_region
          %s183 = sand.u32 %s27, 1
          %s184 = scalar_lea.sflag [#allocation3], %s183
          %s185 = sand.u32 %s27, 1
          %s186 = smul.addr %s185, 8
          %s187 = scalar_lea.vmem [#allocation2], %s186
          %s189 = ssub.s32 128, 128
          %190 = vsyncadd %s184, %s189
          %s191 = smul.addr %s17, 128
          %s192 = scalar_lea.hbm %s0, %s191
          %s194 = sshll.u32 %s187, 4
          %s195 = int_to_ptr.vmem [resolvable:$true] %s194
          %197 = dma.hbm_to_vmem [thread:$0]  %s192, 128, %s195, %s184
        $region32: #{tpu_custom_call.1} parent=27 // pred_fallthru
          _
      $region28: #{tpu_custom_call.1} parent=5 // pred_fallthru
        _
      %p198 = scmp.le.s32.totalorder 1, %s17
      %p199 = scmp.lt.s32.totalorder %s17, 3
      %p200 = pnand %p198, %p199
      %p201 = pneg %p200
      // Predicated region
      $region33: #{tpu_custom_call.1} parent=5 // pred_check
        _
      $region34: #{tpu_custom_call.1} parent=5 // pred_check_branch
        %203 = sbr.rel (%p200) target = $region36
      $region35: #{tpu_custom_call.1} parent=5 // pred_region
        %s204 = ssub.s32 %s17, 1
        %s205 = sand.u32 %s30, 1
        %s206 = scalar_lea.sflag [#allocation3], %s205
        %s207 = sand.u32 %s30, 1
        %s208 = smul.addr %s207, 8
        %s209 = scalar_lea.vmem [#allocation2], %s208
        // Predicated region
        $region37: #{tpu_custom_call.1} parent=35 // pred_check
          %p210 = pneg %p43
        $region38: #{tpu_custom_call.1} parent=35 // pred_check_branch
          %212 = sbr.rel (%p210) target = $region40
        $region39: #{tpu_custom_call.1} parent=35 // pred_region
          %213 = dma.done %s206, 128
        $region40: #{tpu_custom_call.1} parent=35 // pred_fallthru
          _
        // Predicated region
        $region41: #{tpu_custom_call.1} parent=35 // pred_check
          %p214 = pneg %p64
        $region42: #{tpu_custom_call.1} parent=35 // pred_check_branch
          %216 = sbr.rel (%p214) target = $region44
        $region43: #{tpu_custom_call.1} parent=35 // pred_region
          %217 = dma.done [#allocation6], 2048
        $region44: #{tpu_custom_call.1} parent=35 // pred_fallthru
          _
        // Predicated region
        $region45: #{tpu_custom_call.1} parent=35 // pred_check
          %p218 = pneg %p106
        $region46: #{tpu_custom_call.1} parent=35 // pred_check_branch
          %220 = sbr.rel (%p218) target = $region48
        $region47: #{tpu_custom_call.1} parent=35 // pred_region
          %221 = dma.done [#allocation6], 2048
        $region48: #{tpu_custom_call.1} parent=35 // pred_fallthru
          _
        %s222 = sand.u32 %s30, 1
        %s223 = scalar_lea.sflag [#allocation3], %s222
        %s224 = sand.u32 %s30, 1
        %s225 = smul.addr %s224, 8
        %s226 = scalar_lea.vmem [#allocation2], %s225
        %p227 = pneg %p43
        %p228 = pneg %p40
        %p229 = pneg %p64
        %p230 = pneg %p61
        %p231 = pneg %p85
        %p232 = pneg %p82
        %p233 = pneg %p106
        %p234 = pneg %p103
        %p235 = pneg %p132
        %p236 = pneg %p129
        %s237 = sand.u32 %s119, 1
        %s238 = scalar_lea.sflag [#allocation4], %s237
        %s239 = sand.u32 %s119, 1
        %s240 = smul.addr %s239, 8
        %s241 = scalar_lea.vmem [#allocation8], %s240
        %v242 = vld [vmem:[%s209] sm:$0xff]
        %v243 = vld [vmem:[#allocation5] sm:$0xff]
        %v244 = vld [vmem:[#allocation5 + $0x8] sm:$0xff]
        %v245 = vld [vmem:[#allocation5 + $0x10] sm:$0xff]
        %v246 = vld [vmem:[#allocation5 + $0x18] sm:$0xff]
        %v247 = vld [vmem:[#allocation5 + $0x20] sm:$0xff]
        %v248 = vld [vmem:[#allocation5 + $0x28] sm:$0xff]
        %v249 = vld [vmem:[#allocation5 + $0x30] sm:$0xff]
        %v250 = vld [vmem:[#allocation5 + $0x38] sm:$0xff]
        %v251 = vld [vmem:[#allocation5 + $0x40] sm:$0xff]
        %v252 = vld [vmem:[#allocation5 + $0x48] sm:$0xff]
        %v253 = vld [vmem:[#allocation5 + $0x50] sm:$0xff]
        %v254 = vld [vmem:[#allocation5 + $0x58] sm:$0xff]
        %v255 = vld [vmem:[#allocation5 + $0x60] sm:$0xff]
        %v256 = vld [vmem:[#allocation5 + $0x68] sm:$0xff]
        %v257 = vld [vmem:[#allocation5 + $0x70] sm:$0xff]
        %v258 = vld [vmem:[#allocation5 + $0x78] sm:$0xff]
        %v259 = vld [vmem:[%s2] sm:$0x1]
        %v261 = vlaneseq
        %v262 = vshrl.u32 %v261, 7
        %v263 = vsub.s32 0, %v262
        %v264 = vrot.slane %v259, %v263
        %266 = vmatprep.subr.mxu0 0.0
        %267 = vmatpush1.msra.mxu0 %v243
        %268 = vmatprep.subr.mxu0 0.0
        %269 = vmatpush1.msra.mxu0 %v244
        %270 = vmatprep.subr.mxu0 0.0
        %271 = vmatpush1.msra.mxu0 %v245
        %272 = vmatprep.subr.mxu0 0.0
        %273 = vmatpush1.msra.mxu0 %v246
        %274 = vmatprep.subr.mxu0 0.0
        %275 = vmatpush1.msra.mxu0 %v247
        %276 = vmatprep.subr.mxu0 0.0
        %277 = vmatpush1.msra.mxu0 %v248
        %278 = vmatprep.subr.mxu0 0.0
        %279 = vmatpush1.msra.mxu0 %v249
        %280 = vmatprep.subr.mxu0 0.0
        %281 = vmatpush1.msra.mxu0 %v250
        %282 = vmatprep.subr.mxu0 0.0
        %283 = vmatpush1.msra.mxu0 %v251
        %284 = vmatprep.subr.mxu0 0.0
        %285 = vmatpush1.msra.mxu0 %v252
        %286 = vmatprep.subr.mxu0 0.0
        %287 = vmatpush1.msra.mxu0 %v253
        %288 = vmatprep.subr.mxu0 0.0
        %289 = vmatpush1.msra.mxu0 %v254
        %290 = vmatprep.subr.mxu0 0.0
        %291 = vmatpush1.msra.mxu0 %v255
        %292 = vmatprep.subr.mxu0 0.0
        %293 = vmatpush1.msra.mxu0 %v256
        %294 = vmatprep.subr.mxu0 0.0
        %295 = vmatpush1.msra.mxu0 %v257
        %296 = vmatprep.subr.mxu0 0.0
        %297 = vmatpush1.msra.mxu0 %v258
        %298 = vmatprep.subr.mxu0 0.0
        %299 = vmatpush1.msra.mxu0 0.0
        %300 = vmatprep.subr.mxu0 0.0
        %301 = vmatpush1.msra.mxu0 0.0
        %302 = vmatprep.subr.mxu0 0.0
        %303 = vmatpush1.msra.mxu0 0.0
        %304 = vmatprep.subr.mxu0 0.0
        %305 = vmatpush1.msra.mxu0 0.0
        %306 = vmatprep.subr.mxu0 0.0
        %307 = vmatpush1.msra.mxu0 0.0
        %308 = vmatprep.subr.mxu0 0.0
        %309 = vmatpush1.msra.mxu0 0.0
        %310 = vmatprep.subr.mxu0 0.0
        %311 = vmatpush1.msra.mxu0 0.0
        %312 = vmatprep.subr.mxu0 0.0
        %313 = vmatpush1.msra.mxu0 0.0
        %314 = vmatprep.subr.mxu0 0.0
        %315 = vmatpush1.msra.mxu0 0.0
        %316 = vmatprep.subr.mxu0 0.0
        %317 = vmatpush1.msra.mxu0 0.0
        %318 = vmatprep.subr.mxu0 0.0
        %319 = vmatpush1.msra.mxu0 0.0
        %320 = vmatprep.subr.mxu0 0.0
        %321 = vmatpush1.msra.mxu0 0.0
        %322 = vmatprep.subr.mxu0 0.0
        %323 = vmatpush1.msra.mxu0 0.0
        %324 = vmatprep.subr.mxu0 0.0
        %325 = vmatpush1.msra.mxu0 0.0
        %326 = vmatprep.subr.mxu0 0.0
        %327 = vmatpush1.msra.mxu0 0.0
        %328 = vmatprep.subr.mxu0 0.0
        %329 = vmatpush1.msra.mxu0 0.0
        %330 = vmatprep.mubr.f32.mxu0 0.0
        %331 = vmatmul.mubr.f32.gmra.mrb[0].mxu0 %v242
        %v332 = vpop.f32.mrb[0].mxu0
        %v333 = vadd.f32 %v264, %v332
        %v334 = vpop.f32.mrb[0].mxu0
        %335 = vdwg.mxu0
        %336 = vmax.xlane.f32.xlu0 %v333
        %v337 = vpop.xlane.xlu0 %336
        %v338 = vsub.f32 %v333, %v337
        %v339 = vmul.f32 %v338, 1.442695
        %v340 = vpow.pop %v339
        %v341 = vld [vmem:[#allocation7] sm:$0xff]
        %v342 = vld [vmem:[#allocation7 + $0x8] sm:$0xff]
        %v343 = vld [vmem:[#allocation7 + $0x10] sm:$0xff]
        %v344 = vld [vmem:[#allocation7 + $0x18] sm:$0xff]
        %v345 = vld [vmem:[#allocation7 + $0x20] sm:$0xff]
        %v346 = vld [vmem:[#allocation7 + $0x28] sm:$0xff]
        %v347 = vld [vmem:[#allocation7 + $0x30] sm:$0xff]
        %v348 = vld [vmem:[#allocation7 + $0x38] sm:$0xff]
        %v349 = vld [vmem:[#allocation7 + $0x40] sm:$0xff]
        %v350 = vld [vmem:[#allocation7 + $0x48] sm:$0xff]
        %v351 = vld [vmem:[#allocation7 + $0x50] sm:$0xff]
        %v352 = vld [vmem:[#allocation7 + $0x58] sm:$0xff]
        %v353 = vld [vmem:[#allocation7 + $0x60] sm:$0xff]
        %v354 = vld [vmem:[#allocation7 + $0x68] sm:$0xff]
        %v355 = vld [vmem:[#allocation7 + $0x70] sm:$0xff]
        %v356 = vld [vmem:[#allocation7 + $0x78] sm:$0xff]
        %357 = vmatprep.subr.mxu0 0.0
        %v358 = vand.u32 %v341, 4294901760
        %359 = vmatpush1.msra.mxu0 %v358
        %360 = vmatprep.subr.mxu0 0.0
        %v361 = vand.u32 %v342, 4294901760
        %362 = vmatpush1.msra.mxu0 %v361
        %363 = vmatprep.subr.mxu0 0.0
        %v364 = vand.u32 %v343, 4294901760
        %365 = vmatpush1.msra.mxu0 %v364
        %366 = vmatprep.subr.mxu0 0.0
        %v367 = vand.u32 %v344, 4294901760
        %368 = vmatpush1.msra.mxu0 %v367
        %369 = vmatprep.subr.mxu0 0.0
        %v370 = vand.u32 %v345, 4294901760
        %371 = vmatpush1.msra.mxu0 %v370
        %372 = vmatprep.subr.mxu0 0.0
        %v373 = vand.u32 %v346, 4294901760
        %374 = vmatpush1.msra.mxu0 %v373
        %375 = vmatprep.subr.mxu0 0.0
        %v376 = vand.u32 %v347, 4294901760
        %377 = vmatpush1.msra.mxu0 %v376
        %378 = vmatprep.subr.mxu0 0.0
        %v379 = vand.u32 %v348, 4294901760
        %380 = vmatpush1.msra.mxu0 %v379
        %381 = vmatprep.subr.mxu0 0.0
        %v382 = vand.u32 %v349, 4294901760
        %383 = vmatpush1.msra.mxu0 %v382
        %384 = vmatprep.subr.mxu0 0.0
        %v385 = vand.u32 %v350, 4294901760
        %386 = vmatpush1.msra.mxu0 %v385
        %387 = vmatprep.subr.mxu0 0.0
        %v388 = vand.u32 %v351, 4294901760
        %389 = vmatpush1.msra.mxu0 %v388
        %390 = vmatprep.subr.mxu0 0.0
        %v391 = vand.u32 %v352, 4294901760
        %392 = vmatpush1.msra.mxu0 %v391
        %393 = vmatprep.subr.mxu0 0.0
        %v394 = vand.u32 %v353, 4294901760
        %395 = vmatpush1.msra.mxu0 %v394
        %396 = vmatprep.subr.mxu0 0.0
        %v397 = vand.u32 %v354, 4294901760
        %398 = vmatpush1.msra.mxu0 %v397
        %399 = vmatprep.subr.mxu0 0.0
        %v400 = vand.u32 %v355, 4294901760
        %401 = vmatpush1.msra.mxu0 %v400
        %402 = vmatprep.subr.mxu0 0.0
        %v403 = vand.u32 %v356, 4294901760
        %404 = vmatpush1.msra.mxu0 %v403
        %405 = vmatprep.subr.mxu0 0.0
        %406 = vmatpush1.msra.mxu0 0.0
        %407 = vmatprep.subr.mxu0 0.0
        %408 = vmatpush1.msra.mxu0 0.0
        %409 = vmatprep.subr.mxu0 0.0
        %410 = vmatpush1.msra.mxu0 0.0
        %411 = vmatprep.subr.mxu0 0.0
        %412 = vmatpush1.msra.mxu0 0.0
        %413 = vmatprep.subr.mxu0 0.0
        %414 = vmatpush1.msra.mxu0 0.0
        %415 = vmatprep.subr.mxu0 0.0
        %416 = vmatpush1.msra.mxu0 0.0
        %417 = vmatprep.subr.mxu0 0.0
        %418 = vmatpush1.msra.mxu0 0.0
        %419 = vmatprep.subr.mxu0 0.0
        %420 = vmatpush1.msra.mxu0 0.0
        %421 = vmatprep.subr.mxu0 0.0
        %422 = vmatpush1.msra.mxu0 0.0
        %423 = vmatprep.subr.mxu0 0.0
        %424 = vmatpush1.msra.mxu0 0.0
        %425 = vmatprep.subr.mxu0 0.0
        %426 = vmatpush1.msra.mxu0 0.0
        %427 = vmatprep.subr.mxu0 0.0
        %428 = vmatpush1.msra.mxu0 0.0
        %429 = vmatprep.subr.mxu0 0.0
        %430 = vmatpush1.msra.mxu0 0.0
        %431 = vmatprep.subr.mxu0 0.0
        %432 = vmatpush1.msra.mxu0 0.0
        %433 = vmatprep.subr.mxu0 0.0
        %434 = vmatpush1.msra.mxu0 0.0
        %435 = vmatprep.subr.mxu0 0.0
        %436 = vmatpush1.msra.mxu0 0.0
        %437 = vmatprep.mubr.f32.mxu0 0.0
        %v438 = vand.u32 %v340, 4294901760
        %v439 = vsub.f32 %v340, %v438
        %v440 = vand.u32 %v439, 4294901760
        %v441 = vsub.f32 %v439, %v440
        %v442 = vand.u32 %v441, 4294901760
        %443 = vmatmul.mubr.f32.gmra.mrb[0].mxu0 %v442
        %v444 = vpop.f32.mrb[0].mxu0
        %v445 = vadd.f32 0.0, %v444
        %v446 = vpop.f32.mrb[0].mxu0
        %447 = vdwg.mxu0
        %448 = vmatprep.subr.mxu0 0.0
        %v449 = vand.u32 %v341, 4294901760
        %v450 = vsub.f32 %v341, %v449
        %v451 = vand.u32 %v450, 4294901760
        %v452 = vsub.f32 %v450, %v451
        %v453 = vand.u32 %v452, 4294901760
        %454 = vmatpush1.msra.mxu0 %v453
        %455 = vmatprep.subr.mxu0 0.0
        %v456 = vand.u32 %v342, 4294901760
        %v457 = vsub.f32 %v342, %v456
        %v458 = vand.u32 %v457, 4294901760
        %v459 = vsub.f32 %v457, %v458
        %v460 = vand.u32 %v459, 4294901760
        %461 = vmatpush1.msra.mxu0 %v460
        %462 = vmatprep.subr.mxu0 0.0
        %v463 = vand.u32 %v343, 4294901760
        %v464 = vsub.f32 %v343, %v463
        %v465 = vand.u32 %v464, 4294901760
        %v466 = vsub.f32 %v464, %v465
        %v467 = vand.u32 %v466, 4294901760
        %468 = vmatpush1.msra.mxu0 %v467
        %469 = vmatprep.subr.mxu0 0.0
        %v470 = vand.u32 %v344, 4294901760
        %v471 = vsub.f32 %v344, %v470
        %v472 = vand.u32 %v471, 4294901760
        %v473 = vsub.f32 %v471, %v472
        %v474 = vand.u32 %v473, 4294901760
        %475 = vmatpush1.msra.mxu0 %v474
        %476 = vmatprep.subr.mxu0 0.0
        %v477 = vand.u32 %v345, 4294901760
        %v478 = vsub.f32 %v345, %v477
        %v479 = vand.u32 %v478, 4294901760
        %v480 = vsub.f32 %v478, %v479
        %v481 = vand.u32 %v480, 4294901760
        %482 = vmatpush1.msra.mxu0 %v481
        %483 = vmatprep.subr.mxu0 0.0
        %v484 = vand.u32 %v346, 4294901760
        %v485 = vsub.f32 %v346, %v484
        %v486 = vand.u32 %v485, 4294901760
        %v487 = vsub.f32 %v485, %v486
        %v488 = vand.u32 %v487, 4294901760
        %489 = vmatpush1.msra.mxu0 %v488
        %490 = vmatprep.subr.mxu0 0.0
        %v491 = vand.u32 %v347, 4294901760
        %v492 = vsub.f32 %v347, %v491
        %v493 = vand.u32 %v492, 4294901760
        %v494 = vsub.f32 %v492, %v493
        %v495 = vand.u32 %v494, 4294901760
        %496 = vmatpush1.msra.mxu0 %v495
        %497 = vmatprep.subr.mxu0 0.0
        %v498 = vand.u32 %v348, 4294901760
        %v499 = vsub.f32 %v348, %v498
        %v500 = vand.u32 %v499, 4294901760
        %v501 = vsub.f32 %v499, %v500
        %v502 = vand.u32 %v501, 4294901760
        %503 = vmatpush1.msra.mxu0 %v502
        %504 = vmatprep.subr.mxu0 0.0
        %v505 = vand.u32 %v349, 4294901760
        %v506 = vsub.f32 %v349, %v505
        %v507 = vand.u32 %v506, 4294901760
        %v508 = vsub.f32 %v506, %v507
        %v509 = vand.u32 %v508, 4294901760
        %510 = vmatpush1.msra.mxu0 %v509
        %511 = vmatprep.subr.mxu0 0.0
        %v512 = vand.u32 %v350, 4294901760
        %v513 = vsub.f32 %v350, %v512
        %v514 = vand.u32 %v513, 4294901760
        %v515 = vsub.f32 %v513, %v514
        %v516 = vand.u32 %v515, 4294901760
        %517 = vmatpush1.msra.mxu0 %v516
        %518 = vmatprep.subr.mxu0 0.0
        %v519 = vand.u32 %v351, 4294901760
        %v520 = vsub.f32 %v351, %v519
        %v521 = vand.u32 %v520, 4294901760
        %v522 = vsub.f32 %v520, %v521
        %v523 = vand.u32 %v522, 4294901760
        %524 = vmatpush1.msra.mxu0 %v523
        %525 = vmatprep.subr.mxu0 0.0
        %v526 = vand.u32 %v352, 4294901760
        %v527 = vsub.f32 %v352, %v526
        %v528 = vand.u32 %v527, 4294901760
        %v529 = vsub.f32 %v527, %v528
        %v530 = vand.u32 %v529, 4294901760
        %531 = vmatpush1.msra.mxu0 %v530
        %532 = vmatprep.subr.mxu0 0.0
        %v533 = vand.u32 %v353, 4294901760
        %v534 = vsub.f32 %v353, %v533
        %v535 = vand.u32 %v534, 4294901760
        %v536 = vsub.f32 %v534, %v535
        %v537 = vand.u32 %v536, 4294901760
        %538 = vmatpush1.msra.mxu0 %v537
        %539 = vmatprep.subr.mxu0 0.0
        %v540 = vand.u32 %v354, 4294901760
        %v541 = vsub.f32 %v354, %v540
        %v542 = vand.u32 %v541, 4294901760
        %v543 = vsub.f32 %v541, %v542
        %v544 = vand.u32 %v543, 4294901760
        %545 = vmatpush1.msra.mxu0 %v544
        %546 = vmatprep.subr.mxu0 0.0
        %v547 = vand.u32 %v355, 4294901760
        %v548 = vsub.f32 %v355, %v547
        %v549 = vand.u32 %v548, 4294901760
        %v550 = vsub.f32 %v548, %v549
        %v551 = vand.u32 %v550, 4294901760
        %552 = vmatpush1.msra.mxu0 %v551
        %553 = vmatprep.subr.mxu0 0.0
        %v554 = vand.u32 %v356, 4294901760
        %v555 = vsub.f32 %v356, %v554
        %v556 = vand.u32 %v555, 4294901760
        %v557 = vsub.f32 %v555, %v556
        %v558 = vand.u32 %v557, 4294901760
        %559 = vmatpush1.msra.mxu0 %v558
        %560 = vmatprep.subr.mxu0 0.0
        %561 = vmatpush1.msra.mxu0 0.0
        %562 = vmatprep.subr.mxu0 0.0
        %563 = vmatpush1.msra.mxu0 0.0
        %564 = vmatprep.subr.mxu0 0.0
        %565 = vmatpush1.msra.mxu0 0.0
        %566 = vmatprep.subr.mxu0 0.0
        %567 = vmatpush1.msra.mxu0 0.0
        %568 = vmatprep.subr.mxu0 0.0
        %569 = vmatpush1.msra.mxu0 0.0
        %570 = vmatprep.subr.mxu0 0.0
        %571 = vmatpush1.msra.mxu0 0.0
        %572 = vmatprep.subr.mxu0 0.0
        %573 = vmatpush1.msra.mxu0 0.0
        %574 = vmatprep.subr.mxu0 0.0
        %575 = vmatpush1.msra.mxu0 0.0
        %576 = vmatprep.subr.mxu0 0.0
        %577 = vmatpush1.msra.mxu0 0.0
        %578 = vmatprep.subr.mxu0 0.0
        %579 = vmatpush1.msra.mxu0 0.0
        %580 = vmatprep.subr.mxu0 0.0
        %581 = vmatpush1.msra.mxu0 0.0
        %582 = vmatprep.subr.mxu0 0.0
        %583 = vmatpush1.msra.mxu0 0.0
        %584 = vmatprep.subr.mxu0 0.0
        %585 = vmatpush1.msra.mxu0 0.0
        %586 = vmatprep.subr.mxu0 0.0
        %587 = vmatpush1.msra.mxu0 0.0
        %588 = vmatprep.subr.mxu0 0.0
        %589 = vmatpush1.msra.mxu0 0.0
        %590 = vmatprep.subr.mxu0 0.0
        %591 = vmatpush1.msra.mxu0 0.0
        %592 = vmatprep.mubr.f32.mxu0 0.0
        %v593 = vand.u32 %v340, 4294901760
        %594 = vmatmul.mubr.f32.gmra.mrb[0].mxu0 %v593
        %v595 = vpop.f32.mrb[0].mxu0
        %v596 = vadd.f32 %v445, %v595
        %v597 = vpop.f32.mrb[0].mxu0
        %598 = vdwg.mxu0
        %599 = vmatprep.subr.mxu0 0.0
        %v600 = vand.u32 %v341, 4294901760
        %v601 = vsub.f32 %v341, %v600
        %602 = vmatpush1.msra.mxu0 %v601
        %603 = vmatprep.subr.mxu0 0.0
        %v604 = vand.u32 %v342, 4294901760
        %v605 = vsub.f32 %v342, %v604
        %606 = vmatpush1.msra.mxu0 %v605
        %607 = vmatprep.subr.mxu0 0.0
        %v608 = vand.u32 %v343, 4294901760
        %v609 = vsub.f32 %v343, %v608
        %610 = vmatpush1.msra.mxu0 %v609
        %611 = vmatprep.subr.mxu0 0.0
        %v612 = vand.u32 %v344, 4294901760
        %v613 = vsub.f32 %v344, %v612
        %614 = vmatpush1.msra.mxu0 %v613
        %615 = vmatprep.subr.mxu0 0.0
        %v616 = vand.u32 %v345, 4294901760
        %v617 = vsub.f32 %v345, %v616
        %618 = vmatpush1.msra.mxu0 %v617
        %619 = vmatprep.subr.mxu0 0.0
        %v620 = vand.u32 %v346, 4294901760
        %v621 = vsub.f32 %v346, %v620
        %622 = vmatpush1.msra.mxu0 %v621
        %623 = vmatprep.subr.mxu0 0.0
        %v624 = vand.u32 %v347, 4294901760
        %v625 = vsub.f32 %v347, %v624
        %626 = vmatpush1.msra.mxu0 %v625
        %627 = vmatprep.subr.mxu0 0.0
        %v628 = vand.u32 %v348, 4294901760
        %v629 = vsub.f32 %v348, %v628
        %630 = vmatpush1.msra.mxu0 %v629
        %631 = vmatprep.subr.mxu0 0.0
        %v632 = vand.u32 %v349, 4294901760
        %v633 = vsub.f32 %v349, %v632
        %634 = vmatpush1.msra.mxu0 %v633
        %635 = vmatprep.subr.mxu0 0.0
        %v636 = vand.u32 %v350, 4294901760
        %v637 = vsub.f32 %v350, %v636
        %638 = vmatpush1.msra.mxu0 %v637
        %639 = vmatprep.subr.mxu0 0.0
        %v640 = vand.u32 %v351, 4294901760
        %v641 = vsub.f32 %v351, %v640
        %642 = vmatpush1.msra.mxu0 %v641
        %643 = vmatprep.subr.mxu0 0.0
        %v644 = vand.u32 %v352, 4294901760
        %v645 = vsub.f32 %v352, %v644
        %646 = vmatpush1.msra.mxu0 %v645
        %647 = vmatprep.subr.mxu0 0.0
        %v648 = vand.u32 %v353, 4294901760
        %v649 = vsub.f32 %v353, %v648
        %650 = vmatpush1.msra.mxu0 %v649
        %651 = vmatprep.subr.mxu0 0.0
        %v652 = vand.u32 %v354, 4294901760
        %v653 = vsub.f32 %v354, %v652
        %654 = vmatpush1.msra.mxu0 %v653
        %655 = vmatprep.subr.mxu0 0.0
        %v656 = vand.u32 %v355, 4294901760
        %v657 = vsub.f32 %v355, %v656
        %658 = vmatpush1.msra.mxu0 %v657
        %659 = vmatprep.subr.mxu0 0.0
        %v660 = vand.u32 %v356, 4294901760
        %v661 = vsub.f32 %v356, %v660
        %662 = vmatpush1.msra.mxu0 %v661
        %663 = vmatprep.subr.mxu0 0.0
        %664 = vmatpush1.msra.mxu0 0.0
        %665 = vmatprep.subr.mxu0 0.0
        %666 = vmatpush1.msra.mxu0 0.0
        %667 = vmatprep.subr.mxu0 0.0
        %668 = vmatpush1.msra.mxu0 0.0
        %669 = vmatprep.subr.mxu0 0.0
        %670 = vmatpush1.msra.mxu0 0.0
        %671 = vmatprep.subr.mxu0 0.0
        %672 = vmatpush1.msra.mxu0 0.0
        %673 = vmatprep.subr.mxu0 0.0
        %674 = vmatpush1.msra.mxu0 0.0
        %675 = vmatprep.subr.mxu0 0.0
        %676 = vmatpush1.msra.mxu0 0.0
        %677 = vmatprep.subr.mxu0 0.0
        %678 = vmatpush1.msra.mxu0 0.0
        %679 = vmatprep.subr.mxu0 0.0
        %680 = vmatpush1.msra.mxu0 0.0
        %681 = vmatprep.subr.mxu0 0.0
        %682 = vmatpush1.msra.mxu0 0.0
        %683 = vmatprep.subr.mxu0 0.0
        %684 = vmatpush1.msra.mxu0 0.0
        %685 = vmatprep.subr.mxu0 0.0
        %686 = vmatpush1.msra.mxu0 0.0
        %687 = vmatprep.subr.mxu0 0.0
        %688 = vmatpush1.msra.mxu0 0.0
        %689 = vmatprep.subr.mxu0 0.0
        %690 = vmatpush1.msra.mxu0 0.0
        %691 = vmatprep.subr.mxu0 0.0
        %692 = vmatpush1.msra.mxu0 0.0
        %693 = vmatprep.subr.mxu0 0.0
        %694 = vmatpush1.msra.mxu0 0.0
        %695 = vmatprep.mubr.f32.mxu0 0.0
        %v696 = vand.u32 %v340, 4294901760
        %v697 = vsub.f32 %v340, %v696
        %698 = vmatmul.mubr.f32.gmra.mrb[0].mxu0 %v697
        %v699 = vpop.f32.mrb[0].mxu0
        %v700 = vadd.f32 %v596, %v699
        %v701 = vpop.f32.mrb[0].mxu0
        %702 = vdwg.mxu0
        %703 = vmatprep.subr.mxu0 0.0
        %v704 = vand.u32 %v341, 4294901760
        %705 = vmatpush1.msra.mxu0 %v704
        %706 = vmatprep.subr.mxu0 0.0
        %v707 = vand.u32 %v342, 4294901760
        %708 = vmatpush1.msra.mxu0 %v707
        %709 = vmatprep.subr.mxu0 0.0
        %v710 = vand.u32 %v343, 4294901760
        %711 = vmatpush1.msra.mxu0 %v710
        %712 = vmatprep.subr.mxu0 0.0
        %v713 = vand.u32 %v344, 4294901760
        %714 = vmatpush1.msra.mxu0 %v713
        %715 = vmatprep.subr.mxu0 0.0
        %v716 = vand.u32 %v345, 4294901760
        %717 = vmatpush1.msra.mxu0 %v716
        %718 = vmatprep.subr.mxu0 0.0
        %v719 = vand.u32 %v346, 4294901760
        %720 = vmatpush1.msra.mxu0 %v719
        %721 = vmatprep.subr.mxu0 0.0
        %v722 = vand.u32 %v347, 4294901760
        %723 = vmatpush1.msra.mxu0 %v722
        %724 = vmatprep.subr.mxu0 0.0
        %v725 = vand.u32 %v348, 4294901760
        %726 = vmatpush1.msra.mxu0 %v725
        %727 = vmatprep.subr.mxu0 0.0
        %v728 = vand.u32 %v349, 4294901760
        %729 = vmatpush1.msra.mxu0 %v728
        %730 = vmatprep.subr.mxu0 0.0
        %v731 = vand.u32 %v350, 4294901760
        %732 = vmatpush1.msra.mxu0 %v731
        %733 = vmatprep.subr.mxu0 0.0
        %v734 = vand.u32 %v351, 4294901760
        %735 = vmatpush1.msra.mxu0 %v734
        %736 = vmatprep.subr.mxu0 0.0
        %v737 = vand.u32 %v352, 4294901760
        %738 = vmatpush1.msra.mxu0 %v737
        %739 = vmatprep.subr.mxu0 0.0
        %v740 = vand.u32 %v353, 4294901760
        %741 = vmatpush1.msra.mxu0 %v740
        %742 = vmatprep.subr.mxu0 0.0
        %v743 = vand.u32 %v354, 4294901760
        %744 = vmatpush1.msra.mxu0 %v743
        %745 = vmatprep.subr.mxu0 0.0
        %v746 = vand.u32 %v355, 4294901760
        %747 = vmatpush1.msra.mxu0 %v746
        %748 = vmatprep.subr.mxu0 0.0
        %v749 = vand.u32 %v356, 4294901760
        %750 = vmatpush1.msra.mxu0 %v749
        %751 = vmatprep.subr.mxu0 0.0
        %752 = vmatpush1.msra.mxu0 0.0
        %753 = vmatprep.subr.mxu0 0.0
        %754 = vmatpush1.msra.mxu0 0.0
        %755 = vmatprep.subr.mxu0 0.0
        %756 = vmatpush1.msra.mxu0 0.0
        %757 = vmatprep.subr.mxu0 0.0
        %758 = vmatpush1.msra.mxu0 0.0
        %759 = vmatprep.subr.mxu0 0.0
        %760 = vmatpush1.msra.mxu0 0.0
        %761 = vmatprep.subr.mxu0 0.0
        %762 = vmatpush1.msra.mxu0 0.0
        %763 = vmatprep.subr.mxu0 0.0
        %764 = vmatpush1.msra.mxu0 0.0
        %765 = vmatprep.subr.mxu0 0.0
        %766 = vmatpush1.msra.mxu0 0.0
        %767 = vmatprep.subr.mxu0 0.0
        %768 = vmatpush1.msra.mxu0 0.0
        %769 = vmatprep.subr.mxu0 0.0
        %770 = vmatpush1.msra.mxu0 0.0
        %771 = vmatprep.subr.mxu0 0.0
        %772 = vmatpush1.msra.mxu0 0.0
        %773 = vmatprep.subr.mxu0 0.0
        %774 = vmatpush1.msra.mxu0 0.0
        %775 = vmatprep.subr.mxu0 0.0
        %776 = vmatpush1.msra.mxu0 0.0
        %777 = vmatprep.subr.mxu0 0.0
        %778 = vmatpush1.msra.mxu0 0.0
        %779 = vmatprep.subr.mxu0 0.0
        %780 = vmatpush1.msra.mxu0 0.0
        %781 = vmatprep.subr.mxu0 0.0
        %782 = vmatpush1.msra.mxu0 0.0
        %783 = vmatprep.mubr.f32.mxu0 0.0
        %v784 = vand.u32 %v340, 4294901760
        %v785 = vsub.f32 %v340, %v784
        %v786 = vand.u32 %v785, 4294901760
        %787 = vmatmul.mubr.f32.gmra.mrb[0].mxu0 %v786
        %v788 = vpop.f32.mrb[0].mxu0
        %v789 = vadd.f32 %v700, %v788
        %v790 = vpop.f32.mrb[0].mxu0
        %791 = vdwg.mxu0
        %792 = vmatprep.subr.mxu0 0.0
        %v793 = vand.u32 %v341, 4294901760
        %v794 = vsub.f32 %v341, %v793
        %v795 = vand.u32 %v794, 4294901760
        %796 = vmatpush1.msra.mxu0 %v795
        %797 = vmatprep.subr.mxu0 0.0
        %v798 = vand.u32 %v342, 4294901760
        %v799 = vsub.f32 %v342, %v798
        %v800 = vand.u32 %v799, 4294901760
        %801 = vmatpush1.msra.mxu0 %v800
        %802 = vmatprep.subr.mxu0 0.0
        %v803 = vand.u32 %v343, 4294901760
        %v804 = vsub.f32 %v343, %v803
        %v805 = vand.u32 %v804, 4294901760
        %806 = vmatpush1.msra.mxu0 %v805
        %807 = vmatprep.subr.mxu0 0.0
        %v808 = vand.u32 %v344, 4294901760
        %v809 = vsub.f32 %v344, %v808
        %v810 = vand.u32 %v809, 4294901760
        %811 = vmatpush1.msra.mxu0 %v810
        %812 = vmatprep.subr.mxu0 0.0
        %v813 = vand.u32 %v345, 4294901760
        %v814 = vsub.f32 %v345, %v813
        %v815 = vand.u32 %v814, 4294901760
        %816 = vmatpush1.msra.mxu0 %v815
        %817 = vmatprep.subr.mxu0 0.0
        %v818 = vand.u32 %v346, 4294901760
        %v819 = vsub.f32 %v346, %v818
        %v820 = vand.u32 %v819, 4294901760
        %821 = vmatpush1.msra.mxu0 %v820
        %822 = vmatprep.subr.mxu0 0.0
        %v823 = vand.u32 %v347, 4294901760
        %v824 = vsub.f32 %v347, %v823
        %v825 = vand.u32 %v824, 4294901760
        %826 = vmatpush1.msra.mxu0 %v825
        %827 = vmatprep.subr.mxu0 0.0
        %v828 = vand.u32 %v348, 4294901760
        %v829 = vsub.f32 %v348, %v828
        %v830 = vand.u32 %v829, 4294901760
        %831 = vmatpush1.msra.mxu0 %v830
        %832 = vmatprep.subr.mxu0 0.0
        %v833 = vand.u32 %v349, 4294901760
        %v834 = vsub.f32 %v349, %v833
        %v835 = vand.u32 %v834, 4294901760
        %836 = vmatpush1.msra.mxu0 %v835
        %837 = vmatprep.subr.mxu0 0.0
        %v838 = vand.u32 %v350, 4294901760
        %v839 = vsub.f32 %v350, %v838
        %v840 = vand.u32 %v839, 4294901760
        %841 = vmatpush1.msra.mxu0 %v840
        %842 = vmatprep.subr.mxu0 0.0
        %v843 = vand.u32 %v351, 4294901760
        %v844 = vsub.f32 %v351, %v843
        %v845 = vand.u32 %v844, 4294901760
        %846 = vmatpush1.msra.mxu0 %v845
        %847 = vmatprep.subr.mxu0 0.0
        %v848 = vand.u32 %v352, 4294901760
        %v849 = vsub.f32 %v352, %v848
        %v850 = vand.u32 %v849, 4294901760
        %851 = vmatpush1.msra.mxu0 %v850
        %852 = vmatprep.subr.mxu0 0.0
        %v853 = vand.u32 %v353, 4294901760
        %v854 = vsub.f32 %v353, %v853
        %v855 = vand.u32 %v854, 4294901760
        %856 = vmatpush1.msra.mxu0 %v855
        %857 = vmatprep.subr.mxu0 0.0
        %v858 = vand.u32 %v354, 4294901760
        %v859 = vsub.f32 %v354, %v858
        %v860 = vand.u32 %v859, 4294901760
        %861 = vmatpush1.msra.mxu0 %v860
        %862 = vmatprep.subr.mxu0 0.0
        %v863 = vand.u32 %v355, 4294901760
        %v864 = vsub.f32 %v355, %v863
        %v865 = vand.u32 %v864, 4294901760
        %866 = vmatpush1.msra.mxu0 %v865
        %867 = vmatprep.subr.mxu0 0.0
        %v868 = vand.u32 %v356, 4294901760
        %v869 = vsub.f32 %v356, %v868
        %v870 = vand.u32 %v869, 4294901760
        %871 = vmatpush1.msra.mxu0 %v870
        %872 = vmatprep.subr.mxu0 0.0
        %873 = vmatpush1.msra.mxu0 0.0
        %874 = vmatprep.subr.mxu0 0.0
        %875 = vmatpush1.msra.mxu0 0.0
        %876 = vmatprep.subr.mxu0 0.0
        %877 = vmatpush1.msra.mxu0 0.0
        %878 = vmatprep.subr.mxu0 0.0
        %879 = vmatpush1.msra.mxu0 0.0
        %880 = vmatprep.subr.mxu0 0.0
        %881 = vmatpush1.msra.mxu0 0.0
        %882 = vmatprep.subr.mxu0 0.0
        %883 = vmatpush1.msra.mxu0 0.0
        %884 = vmatprep.subr.mxu0 0.0
        %885 = vmatpush1.msra.mxu0 0.0
        %886 = vmatprep.subr.mxu0 0.0
        %887 = vmatpush1.msra.mxu0 0.0
        %888 = vmatprep.subr.mxu0 0.0
        %889 = vmatpush1.msra.mxu0 0.0
        %890 = vmatprep.subr.mxu0 0.0
        %891 = vmatpush1.msra.mxu0 0.0
        %892 = vmatprep.subr.mxu0 0.0
        %893 = vmatpush1.msra.mxu0 0.0
        %894 = vmatprep.subr.mxu0 0.0
        %895 = vmatpush1.msra.mxu0 0.0
        %896 = vmatprep.subr.mxu0 0.0
        %897 = vmatpush1.msra.mxu0 0.0
        %898 = vmatprep.subr.mxu0 0.0
        %899 = vmatpush1.msra.mxu0 0.0
        %900 = vmatprep.subr.mxu0 0.0
        %901 = vmatpush1.msra.mxu0 0.0
        %902 = vmatprep.subr.mxu0 0.0
        %903 = vmatpush1.msra.mxu0 0.0
        %904 = vmatprep.mubr.f32.mxu0 0.0
        %v905 = vand.u32 %v340, 4294901760
        %906 = vmatmul.mubr.f32.gmra.mrb[0].mxu0 %v905
        %v907 = vpop.f32.mrb[0].mxu0
        %v908 = vadd.f32 %v789, %v907
        %v909 = vpop.f32.mrb[0].mxu0
        %910 = vdwg.mxu0
        %911 = vmatprep.subr.mxu0 0.0
        %v912 = vand.u32 %v341, 4294901760
        %913 = vmatpush1.msra.mxu0 %v912
        %914 = vmatprep.subr.mxu0 0.0
        %v915 = vand.u32 %v342, 4294901760
        %916 = vmatpush1.msra.mxu0 %v915
        %917 = vmatprep.subr.mxu0 0.0
        %v918 = vand.u32 %v343, 4294901760
        %919 = vmatpush1.msra.mxu0 %v918
        %920 = vmatprep.subr.mxu0 0.0
        %v921 = vand.u32 %v344, 4294901760
        %922 = vmatpush1.msra.mxu0 %v921
        %923 = vmatprep.subr.mxu0 0.0
        %v924 = vand.u32 %v345, 4294901760
        %925 = vmatpush1.msra.mxu0 %v924
        %926 = vmatprep.subr.mxu0 0.0
        %v927 = vand.u32 %v346, 4294901760
        %928 = vmatpush1.msra.mxu0 %v927
        %929 = vmatprep.subr.mxu0 0.0
        %v930 = vand.u32 %v347, 4294901760
        %931 = vmatpush1.msra.mxu0 %v930
        %932 = vmatprep.subr.mxu0 0.0
        %v933 = vand.u32 %v348, 4294901760
        %934 = vmatpush1.msra.mxu0 %v933
        %935 = vmatprep.subr.mxu0 0.0
        %v936 = vand.u32 %v349, 4294901760
        %937 = vmatpush1.msra.mxu0 %v936
        %938 = vmatprep.subr.mxu0 0.0
        %v939 = vand.u32 %v350, 4294901760
        %940 = vmatpush1.msra.mxu0 %v939
        %941 = vmatprep.subr.mxu0 0.0
        %v942 = vand.u32 %v351, 4294901760
        %943 = vmatpush1.msra.mxu0 %v942
        %944 = vmatprep.subr.mxu0 0.0
        %v945 = vand.u32 %v352, 4294901760
        %946 = vmatpush1.msra.mxu0 %v945
        %947 = vmatprep.subr.mxu0 0.0
        %v948 = vand.u32 %v353, 4294901760
        %949 = vmatpush1.msra.mxu0 %v948
        %950 = vmatprep.subr.mxu0 0.0
        %v951 = vand.u32 %v354, 4294901760
        %952 = vmatpush1.msra.mxu0 %v951
        %953 = vmatprep.subr.mxu0 0.0
        %v954 = vand.u32 %v355, 4294901760
        %955 = vmatpush1.msra.mxu0 %v954
        %956 = vmatprep.subr.mxu0 0.0
        %v957 = vand.u32 %v356, 4294901760
        %958 = vmatpush1.msra.mxu0 %v957
        %959 = vmatprep.subr.mxu0 0.0
        %960 = vmatpush1.msra.mxu0 0.0
        %961 = vmatprep.subr.mxu0 0.0
        %962 = vmatpush1.msra.mxu0 0.0
        %963 = vmatprep.subr.mxu0 0.0
        %964 = vmatpush1.msra.mxu0 0.0
        %965 = vmatprep.subr.mxu0 0.0
        %966 = vmatpush1.msra.mxu0 0.0
        %967 = vmatprep.subr.mxu0 0.0
        %968 = vmatpush1.msra.mxu0 0.0
        %969 = vmatprep.subr.mxu0 0.0
        %970 = vmatpush1.msra.mxu0 0.0
        %971 = vmatprep.subr.mxu0 0.0
        %972 = vmatpush1.msra.mxu0 0.0
        %973 = vmatprep.subr.mxu0 0.0
        %974 = vmatpush1.msra.mxu0 0.0
        %975 = vmatprep.subr.mxu0 0.0
        %976 = vmatpush1.msra.mxu0 0.0
        %977 = vmatprep.subr.mxu0 0.0
        %978 = vmatpush1.msra.mxu0 0.0
        %979 = vmatprep.subr.mxu0 0.0
        %980 = vmatpush1.msra.mxu0 0.0
        %981 = vmatprep.subr.mxu0 0.0
        %982 = vmatpush1.msra.mxu0 0.0
        %983 = vmatprep.subr.mxu0 0.0
        %984 = vmatpush1.msra.mxu0 0.0
        %985 = vmatprep.subr.mxu0 0.0
        %986 = vmatpush1.msra.mxu0 0.0
        %987 = vmatprep.subr.mxu0 0.0
        %988 = vmatpush1.msra.mxu0 0.0
        %989 = vmatprep.subr.mxu0 0.0
        %990 = vmatpush1.msra.mxu0 0.0
        %991 = vmatprep.mubr.f32.mxu0 0.0
        %v992 = vand.u32 %v340, 4294901760
        %993 = vmatmul.mubr.f32.gmra.mrb[0].mxu0 %v992
        %v994 = vpop.f32.mrb[0].mxu0
        %v995 = vadd.f32 %v908, %v994
        %v996 = vpop.f32.mrb[0].mxu0
        %997 = vdwg.mxu0
        %v998 = vrcp.pop %v995
        %v999 = vmul.f32 %v340, %v998
        %v1000 = vmul.f32 %v242, %v999
        %1001 = vst [vmem:[%s241] sm:$0xff] %v1000
        %s1002 = sand.u32 %s119, 1
        %s1003 = scalar_lea.sflag [#allocation4], %s1002
        %s1004 = sand.u32 %s119, 1
        %s1005 = smul.addr %s1004, 8
        %s1006 = scalar_lea.vmem [#allocation8], %s1005
        // Predicated region
        $region49: #{tpu_custom_call.1} parent=35 // pred_check
          %p1007 = pneg %p129
        $region50: #{tpu_custom_call.1} parent=35 // pred_check_branch
          %1009 = sbr.rel (%p1007) target = $region52
        $region51: #{tpu_custom_call.1} parent=35 // pred_region
          %s1011 = ssub.s32 128, 128
          %1012 = vsyncadd %s1003, %s1011
          %s1013 = smul.addr %s22, 128
          %s1014 = scalar_lea.hbm %s4, %s1013
          %s1016 = sshll.u32 %s1006, 4
          %s1017 = int_to_ptr.vmem [resolvable:$true] %s1016
          %1019 = dma.vmem_to_hbm [thread:$0]  %s1017, 128, %s1014, %s1003
        $region52: #{tpu_custom_call.1} parent=35 // pred_fallthru
          _
      $region36: #{tpu_custom_call.1} parent=5 // pred_fallthru
        _
      %p1020 = scmp.le.s32.totalorder 2, %s17
      // Predicated region
      $region53: #{tpu_custom_call.1} parent=5 // pred_check
        %p1021 = pneg %p1020
      $region54: #{tpu_custom_call.1} parent=5 // pred_check_branch
        %1023 = sbr.rel (%p1021) target = $region56
      $region55: #{tpu_custom_call.1} parent=5 // pred_region
        %s1024 = ssub.s32 %s17, 2
        // Predicated region
        $region57: #{tpu_custom_call.1} parent=55 // pred_check
          %p1025 = pneg %p135
        $region58: #{tpu_custom_call.1} parent=55 // pred_check_branch
          %1027 = sbr.rel (%p1025) target = $region60
        $region59: #{tpu_custom_call.1} parent=55 // pred_region
          %s1028 = sand.u32 %s120, 1
          %s1029 = scalar_lea.sflag [#allocation4], %s1028
          %s1030 = sand.u32 %s120, 1
          %s1031 = smul.addr %s1030, 8
          %s1032 = scalar_lea.vmem [#allocation8], %s1031
          %1033 = dma.done %s1029, 128
        $region60: #{tpu_custom_call.1} parent=55 // pred_fallthru
          _
      $region56: #{tpu_custom_call.1} parent=5 // pred_fallthru
        _
    $region6: #{tpu_custom_call.1} parent=1 // loop_footer
      %s21 = sadd.s32 1, %s17
    $region7: #{tpu_custom_call.1} parent=1 // loop_footer_branch
      %16 = sbr.rel target = $region3
    $region8: #{tpu_custom_call.1} parent=1 // loop_exit
      _
    %1034 = vsyncpa [#allocation3], 1
    %s1035 = scalar_lea.sflag [#allocation3], 1
    %1036 = vsyncpa %s1035, 1
    %1037 = vsyncpa [#allocation6], 1
    %1038 = vsyncpa [#allocation4], 1
    %s1039 = scalar_lea.sflag [#allocation4], 1
    %1040 = vsyncpa %s1039, 1

</llo_original>
